<compile_context>
chip_gen: v5e
topology: v5e:2x2
jax: 0.10.0
libtpu: 0.0.40
codegen_flags: <defaults>
</compile_context>

<pallas_src>
import functools
import numpy as np
import jax
import jax.numpy as jnp
from jax.experimental import pallas as pl
from jax.experimental.pallas import tpu as pltpu

# ----------------------- "config.json" / data_index.info (synthetic) ----------------
CONFIG = dict(second_split=4, hidden_size=32, num_layers=2, dropout=0.0,
              proj_hidden_size=32)
FEATURE_SIZE = 4
X_SIZE = FEATURE_SIZE * CONFIG["second_split"]          # ss * fs = 16


# ------------------------------- fused forward kernel --------------------------------
def _fused_rnn_kernel(num_layers, batch, seq, hidden, x_ref, mask_ref, *refs):
    """refs = [wih_t, whh_t, b] * num_layers, w1_t, b1, w2_t, b2, out_ref.

    x_ref   : (seq*batch, in_size) f32, time-major flat rows (row = t*batch + b)
    mask_ref: (seq*batch, 1)       f32, 1.0 where t < lens[b] else 0.0
    """
    layer_refs = refs[:3 * num_layers]
    w1_ref, b1_ref, w2_ref, b2_ref, out_ref = refs[3 * num_layers:]
    f32 = jnp.float32
    H = hidden

    # Weights / biases loaded once; vreg-resident across the fully unrolled wavefront.
    wih = [layer_refs[3 * l + 0][...] for l in range(num_layers)]
    whh = [layer_refs[3 * l + 1][...] for l in range(num_layers)]
    bias = [layer_refs[3 * l + 2][...] for l in range(num_layers)]

    # Layer-0 input projection hoisted out of the recurrence: one MXU pass for all steps.
    g_all0 = jnp.dot(x_ref[...], wih[0], preferred_element_type=f32) + bias[0]

    def lstm_step(gates_pre, h, c, whh_l):
        gates = gates_pre + jnp.dot(h, whh_l, preferred_element_type=f32)
        sig = jax.nn.sigmoid(gates)              # i, f, o: one full-width EUP pass
        th = jnp.tanh(gates)                     # g:       one full-width EUP pass
        i_g = sig[:, 0 * H:1 * H]
        f_g = sig[:, 1 * H:2 * H]
        g_g = th[:, 2 * H:3 * H]
        o_g = sig[:, 3 * H:4 * H]
        c_new = f_g * c + i_g * g_g
        h_new = o_g * jnp.tanh(c_new)
        return h_new, c_new

    zero = jnp.zeros((batch, H), f32)
    h = [zero] * num_layers
    c = [zero] * num_layers
    prev_out = [None] * num_layers               # latest output of each layer (SSA values)
    final_outs = [None] * seq

    # Wavefront: at wave w, layer l advances to timestep t = w - l.  Work items within one
    # wave are mutually independent, so the serial chain is ~seq + num_layers - 1 steps.
    # NOTE: no h/c freeze past lens[b] (dead work, see module-level TODO); padded-step
    # outputs are zeroed below, which reproduces pad_packed exactly.
    for w in range(seq + num_layers - 1):
        ready = list(prev_out)                   # outputs produced up to the previous wave
        for l in range(num_layers):
            t = w - l
            if t < 0 or t >= seq:
                continue
            if l == 0:
                # Contiguous, tile-aligned (batch, 4H) slab of the hoisted projection.
                gates_pre = g_all0[t * batch:(t + 1) * batch, :]
            else:
                gates_pre = (jnp.dot(ready[l - 1], wih[l],
                                     preferred_element_type=f32) + bias[l])
            h_new, c_new = lstm_step(gates_pre, h[l], c[l], whh[l])
            h[l], c[l] = h_new, c_new
            prev_out[l] = h_new
            if l == num_layers - 1:
                final_outs[t] = h_new

    # Stack the final layer once (time-major, tile-aligned sublane concat), zero padded
    # timesteps (pad_packed), then run the projection MLP over all rows in one shot.
    lstm_out = jnp.concatenate(final_outs, axis=0) * mask_ref[...]
    z = jnp.maximum(lstm_out, 0.0)
    z = jnp.maximum(jnp.dot(z, w1_ref[...], preferred_element_type=f32) + b1_ref[...], 0.0)
    y = jnp.dot(z, w2_ref[...], preferred_element_type=f32) + b2_ref[...]
    # Rows with t >= lens[b] equal proj_net(0) = w2 @ relu(b1) + b2, exactly like
    # pad_packed (zeros) followed by the MLP in the PyTorch module.
    out_ref[...] = y.astype(out_ref.dtype)


def rnn_forward(params, X, lens):
    batch, seq, ss, fs = X.shape
    xs = ss * fs
    num_layers = len(params["lstm"])
    hidden = params["lstm"][0]["whh_t"].shape[0]

    # Pad batch to a sublane multiple so every per-step slice / concat in the kernel is
    # (8, .) tile-aligned; compute cost is unchanged, only a few KB of extra DMA.
    bpad = -(-batch // 8) * 8
    x = X.reshape(batch, seq, xs).astype(jnp.float32)
    x = jnp.pad(x, ((0, bpad - batch), (0, 0), (0, 0)))
    # Time-major flat rows (row = t*bpad + b): contiguous per-step slabs in the kernel.
    x_tm = jnp.transpose(x, (1, 0, 2)).reshape(seq * bpad, xs)

    # pad_packed zero-mask, precomputed once in the wrapper (no per-step compares inside).
    lens_p = jnp.pad(lens.astype(jnp.int32), (0, bpad - batch))
    mask = (jnp.arange(seq, dtype=jnp.int32)[:, None] < lens_p[None, :])
    mask = mask.astype(jnp.float32).reshape(seq * bpad, 1)

    layer_args = []
    for layer in params["lstm"]:
        layer_args += [layer["wih_t"], layer["whh_t"], layer["b"]]

    kernel = functools.partial(_fused_rnn_kernel, num_layers, bpad, seq, hidden)
    out_flat = pl.pallas_call(
        kernel,
        out_shape=jax.ShapeDtypeStruct((seq * bpad, xs), jnp.float32),
        # Whole problem (weights ~50 KB + activations a few KB) is VMEM-resident; no grid.
        # At larger batch, add a batch-tile grid with dimension_semantics=("parallel",)
        # so v7x can use both TensorCores, and re-derive tiles for its 64 MiB VMEM.
        compiler_params=pltpu.CompilerParams(vmem_limit_bytes=16 * 1024 * 1024),
    )(x_tm, mask, *layer_args,
      params["w1_t"], params["b1"], params["w2_t"], params["b2"])

    out = jnp.transpose(out_flat.reshape(seq, bpad, xs), (1, 0, 2))[:batch]
    return out


# ------------------------------ pure-JAX reference -------------------------------------
def _lstm_layer_ref(x_tm, mask_tm, wih_t, whh_t, b):
    seq, batch, _ = x_tm.shape
    H = whh_t.shape[0]
    hp = jax.lax.Precision.HIGHEST

    def step(carry, inp):
        h, c = carry
        x_t, m_t = inp
        gates = (jnp.dot(x_t, wih_t, precision=hp)
                 + jnp.dot(h, whh_t, precision=hp) + b)
        i = jax.nn.sigmoid(gates[:, :H])
        f = jax.nn.sigmoid(gates[:, H:2 * H])
        g = jnp.tanh(gates[:, 2 * H:3 * H])
        o = jax.nn.sigmoid(gates[:, 3 * H:])
        c_new = f * c + i * g
        h_new = o * jnp.tanh(c_new)
        h2 = m_t * h_new + (1.0 - m_t) * h
        c2 = m_t * c_new + (1.0 - m_t) * c
        return (h2, c2), m_t * h_new

    init = (jnp.zeros((batch, H), jnp.float32), jnp.zeros((batch, H), jnp.float32))
    _, outs = jax.lax.scan(step, init, (x_tm, mask_tm))
    return outs


def rnn_forward_ref(params, X, lens):
    batch, seq, ss, fs = X.shape
    hp = jax.lax.Precision.HIGHEST
    x = X.reshape(batch, seq, ss * fs).astype(jnp.float32)
    x_tm = jnp.transpose(x, (1, 0, 2))
    mask_tm = (jnp.arange(seq)[:, None] < lens[None, :]).astype(jnp.float32)[:, :, None]
    h = x_tm
    for layer in params["lstm"]:
        h = _lstm_layer_ref(h, mask_tm, layer["wih_t"], layer["whh_t"], layer["b"])
    flat = jnp.transpose(h, (1, 0, 2)).reshape(batch * seq, -1)
    y = jnp.dot(jnp.maximum(flat, 0.0), params["w1_t"], precision=hp) + params["b1"]
    y = jnp.dot(jnp.maximum(y, 0.0), params["w2_t"], precision=hp) + params["b2"]
    return y.reshape(batch, seq, -1)


# ----------------------------------- params init ---------------------------------------
def init_params(key):
    H = CONFIG["hidden_size"]
    PH = CONFIG["proj_hidden_size"]
    params = {"lstm": []}
    in_size = X_SIZE
    bound = 1.0 / np.sqrt(H)
    for _ in range(CONFIG["num_layers"]):
        key, k1, k2, k3, k4 = jax.random.split(key, 5)
        wih = jax.random.uniform(k1, (4 * H, in_size), jnp.float32, -bound, bound)
        whh = jax.random.uniform(k2, (4 * H, H), jnp.float32, -bound, bound)
        bih = jax.random.uniform(k3, (4 * H,), jnp.float32, -bound, bound)
        bhh = jax.random.uniform(k4, (4 * H,), jnp.float32, -bound, bound)
        params["lstm"].append(dict(wih_t=wih.T, whh_t=whh.T, b=(bih + bhh)[None, :]))
        in_size = H
    key, k1, k2, k3, k4 = jax.random.split(key, 5)
    b1_bound = 1.0 / np.sqrt(H)
    b2_bound = 1.0 / np.sqrt(PH)
    w1 = jax.random.uniform(k1, (PH, H), jnp.float32, -b1_bound, b1_bound)
    b1 = jax.random.uniform(k2, (PH,), jnp.float32, -b1_bound, b1_bound)
    w2 = jax.random.uniform(k3, (X_SIZE, PH), jnp.float32, -b2_bound, b2_bound)
    b2 = jax.random.uniform(k4, (X_SIZE,), jnp.float32, -b2_bound, b2_bound)
    params.update(w1_t=w1.T, b1=b1[None, :], w2_t=w2.T, b2=b2[None, :])
    return params


if __name__ == "__main__":
    key = jax.random.PRNGKey(0)
    key, pkey, xkey = jax.random.split(key, 3)
    params = init_params(pkey)

    batch, seq_len, ss, fs = 2, 8, CONFIG["second_split"], FEATURE_SIZE
    X = jax.random.normal(xkey, (batch, seq_len, ss, fs), jnp.float32)
    lens = jnp.array([8, 5], dtype=jnp.int32)   # max(lens) == seq_len, as in the module

    fwd = jax.jit(functools.partial(rnn_forward, params))
    out = jax.block_until_ready(fwd(X, lens))
    assert out.shape == (batch, seq_len, ss * fs)

    ref = jax.block_until_ready(rnn_forward_ref(params, X, lens))
    # Tightened 10x vs v1 (1e-2 -> 1e-3) per review; kept >= 1e-3 because the MXU executes
    # f32 matmuls via bf16-pass decomposition whose pass count may differ from the
    # precision=HIGHEST XLA reference.
    np.testing.assert_allclose(np.asarray(out), np.asarray(ref), rtol=1e-3, atol=1e-3)

    print("KERNEL_OK")
</pallas_src>

<mosaic_0001>
module attributes {stable_mosaic.version = 11 : i64} {
  func.func @_fused_rnn_kernel(%arg0: memref<64x16xf32, #tpu.memory_space<vmem>>, %arg1: memref<64x1xf32, #tpu.memory_space<vmem>>, %arg2: memref<16x128xf32, #tpu.memory_space<vmem>>, %arg3: memref<32x128xf32, #tpu.memory_space<vmem>>, %arg4: memref<1x128xf32, #tpu.memory_space<vmem>>, %arg5: memref<32x128xf32, #tpu.memory_space<vmem>>, %arg6: memref<32x128xf32, #tpu.memory_space<vmem>>, %arg7: memref<1x128xf32, #tpu.memory_space<vmem>>, %arg8: memref<32x32xf32, #tpu.memory_space<vmem>>, %arg9: memref<1x32xf32, #tpu.memory_space<vmem>>, %arg10: memref<32x16xf32, #tpu.memory_space<vmem>>, %arg11: memref<1x16xf32, #tpu.memory_space<vmem>>, %arg12: memref<64x16xf32, #tpu.memory_space<vmem>>) attributes {dimension_semantics = [], scalar_prefetch = 0 : i64, scratch_operands = 0 : i64, tpu.core_type = #tpu.core_type<tc>} {
    %c0 = arith.constant 0 : index
    %c0_0 = arith.constant 0 : index
    %0 = vector.load %arg2[%c0, %c0_0] : memref<16x128xf32, #tpu.memory_space<vmem>>, vector<16x128xf32>
    %c0_1 = arith.constant 0 : index
    %c0_2 = arith.constant 0 : index
    %1 = vector.load %arg5[%c0_1, %c0_2] : memref<32x128xf32, #tpu.memory_space<vmem>>, vector<32x128xf32>
    %c0_3 = arith.constant 0 : index
    %c0_4 = arith.constant 0 : index
    %2 = vector.load %arg3[%c0_3, %c0_4] : memref<32x128xf32, #tpu.memory_space<vmem>>, vector<32x128xf32>
    %c0_5 = arith.constant 0 : index
    %c0_6 = arith.constant 0 : index
    %3 = vector.load %arg6[%c0_5, %c0_6] : memref<32x128xf32, #tpu.memory_space<vmem>>, vector<32x128xf32>
    %c0_7 = arith.constant 0 : index
    %c0_8 = arith.constant 0 : index
    %4 = vector.load %arg4[%c0_7, %c0_8] : memref<1x128xf32, #tpu.memory_space<vmem>>, vector<1x128xf32>
    %c0_9 = arith.constant 0 : index
    %c0_10 = arith.constant 0 : index
    %5 = vector.load %arg7[%c0_9, %c0_10] : memref<1x128xf32, #tpu.memory_space<vmem>>, vector<1x128xf32>
    %c0_11 = arith.constant 0 : index
    %c0_12 = arith.constant 0 : index
    %6 = vector.load %arg0[%c0_11, %c0_12] : memref<64x16xf32, #tpu.memory_space<vmem>>, vector<64x16xf32>
    %cst = arith.constant dense<0.000000e+00> : vector<64x128xf32>
    %7 = tpu.matmul %6, %0, %cst {dimension_numbers = #tpu.dot_dimension_numbers<[1], [0], [0], [1], [0, 0, 1, 1], [], []>} : vector<64x16xf32>, vector<16x128xf32>, vector<64x128xf32> -> vector<64x128xf32>
    %8 = vector.broadcast %4 : vector<1x128xf32> to vector<64x128xf32>
    %9 = arith.addf %7, %8 : vector<64x128xf32>
    %cst_13 = arith.constant 0.000000e+00 : f32
    %10 = vector.broadcast %cst_13 : f32 to vector<8x32xf32>
    %11 = vector.extract_strided_slice %9 {offsets = [0, 0], sizes = [8, 128], strides = [1, 1]} : vector<64x128xf32> to vector<8x128xf32>
    %cst_14 = arith.constant dense<0.000000e+00> : vector<8x128xf32>
    %12 = tpu.matmul %10, %2, %cst_14 {dimension_numbers = #tpu.dot_dimension_numbers<[1], [0], [0], [1], [0, 0, 1, 1], [], []>} : vector<8x32xf32>, vector<32x128xf32>, vector<8x128xf32> -> vector<8x128xf32>
    %13 = arith.addf %11, %12 : vector<8x128xf32>
    %14 = arith.negf %13 : vector<8x128xf32>
    %15 = math.exp %14 : vector<8x128xf32>
    %cst_15 = arith.constant 1.000000e+00 : f32
    %16 = vector.broadcast %cst_15 : f32 to vector<8x128xf32>
    %17 = arith.addf %16, %15 : vector<8x128xf32>
    %18 = arith.divf %16, %17 : vector<8x128xf32>
    %19 = math.tanh %13 : vector<8x128xf32>
    %20 = vector.extract_strided_slice %18 {offsets = [0, 0], sizes = [8, 32], strides = [1, 1]} : vector<8x128xf32> to vector<8x32xf32>
    %21 = vector.extract_strided_slice %18 {offsets = [0, 32], sizes = [8, 32], strides = [1, 1]} : vector<8x128xf32> to vector<8x32xf32>
    %22 = vector.extract_strided_slice %19 {offsets = [0, 64], sizes = [8, 32], strides = [1, 1]} : vector<8x128xf32> to vector<8x32xf32>
    %23 = vector.extract_strided_slice %18 {offsets = [0, 96], sizes = [8, 32], strides = [1, 1]} : vector<8x128xf32> to vector<8x32xf32>
    %24 = arith.mulf %21, %10 : vector<8x32xf32>
    %25 = arith.mulf %20, %22 : vector<8x32xf32>
    %26 = arith.addf %24, %25 : vector<8x32xf32>
    %27 = math.tanh %26 : vector<8x32xf32>
    %28 = arith.mulf %23, %27 : vector<8x32xf32>
    %29 = vector.extract_strided_slice %9 {offsets = [8, 0], sizes = [8, 128], strides = [1, 1]} : vector<64x128xf32> to vector<8x128xf32>
    %cst_16 = arith.constant dense<0.000000e+00> : vector<8x128xf32>
    %30 = tpu.matmul %28, %2, %cst_16 {dimension_numbers = #tpu.dot_dimension_numbers<[1], [0], [0], [1], [0, 0, 1, 1], [], []>} : vector<8x32xf32>, vector<32x128xf32>, vector<8x128xf32> -> vector<8x128xf32>
    %31 = arith.addf %29, %30 : vector<8x128xf32>
    %32 = arith.negf %31 : vector<8x128xf32>
    %33 = math.exp %32 : vector<8x128xf32>
    %cst_17 = arith.constant 1.000000e+00 : f32
    %34 = vector.broadcast %cst_17 : f32 to vector<8x128xf32>
    %35 = arith.addf %34, %33 : vector<8x128xf32>
    %36 = arith.divf %34, %35 : vector<8x128xf32>
    %37 = math.tanh %31 : vector<8x128xf32>
    %38 = vector.extract_strided_slice %36 {offsets = [0, 0], sizes = [8, 32], strides = [1, 1]} : vector<8x128xf32> to vector<8x32xf32>
    %39 = vector.extract_strided_slice %36 {offsets = [0, 32], sizes = [8, 32], strides = [1, 1]} : vector<8x128xf32> to vector<8x32xf32>
    %40 = vector.extract_strided_slice %37 {offsets = [0, 64], sizes = [8, 32], strides = [1, 1]} : vector<8x128xf32> to vector<8x32xf32>
    %41 = vector.extract_strided_slice %36 {offsets = [0, 96], sizes = [8, 32], strides = [1, 1]} : vector<8x128xf32> to vector<8x32xf32>
    %42 = arith.mulf %39, %26 : vector<8x32xf32>
    %43 = arith.mulf %38, %40 : vector<8x32xf32>
    %44 = arith.addf %42, %43 : vector<8x32xf32>
    %45 = math.tanh %44 : vector<8x32xf32>
    %46 = arith.mulf %41, %45 : vector<8x32xf32>
    %cst_18 = arith.constant dense<0.000000e+00> : vector<8x128xf32>
    %47 = tpu.matmul %28, %1, %cst_18 {dimension_numbers = #tpu.dot_dimension_numbers<[1], [0], [0], [1], [0, 0, 1, 1], [], []>} : vector<8x32xf32>, vector<32x128xf32>, vector<8x128xf32> -> vector<8x128xf32>
    %48 = vector.broadcast %5 : vector<1x128xf32> to vector<8x128xf32>
    %49 = arith.addf %47, %48 : vector<8x128xf32>
    %cst_19 = arith.constant dense<0.000000e+00> : vector<8x128xf32>
    %50 = tpu.matmul %10, %3, %cst_19 {dimension_numbers = #tpu.dot_dimension_numbers<[1], [0], [0], [1], [0, 0, 1, 1], [], []>} : vector<8x32xf32>, vector<32x128xf32>, vector<8x128xf32> -> vector<8x128xf32>
    %51 = arith.addf %49, %50 : vector<8x128xf32>
    %52 = arith.negf %51 : vector<8x128xf32>
    %53 = math.exp %52 : vector<8x128xf32>
    %cst_20 = arith.constant 1.000000e+00 : f32
    %54 = vector.broadcast %cst_20 : f32 to vector<8x128xf32>
    %55 = arith.addf %54, %53 : vector<8x128xf32>
    %56 = arith.divf %54, %55 : vector<8x128xf32>
    %57 = math.tanh %51 : vector<8x128xf32>
    %58 = vector.extract_strided_slice %56 {offsets = [0, 0], sizes = [8, 32], strides = [1, 1]} : vector<8x128xf32> to vector<8x32xf32>
    %59 = vector.extract_strided_slice %56 {offsets = [0, 32], sizes = [8, 32], strides = [1, 1]} : vector<8x128xf32> to vector<8x32xf32>
    %60 = vector.extract_strided_slice %57 {offsets = [0, 64], sizes = [8, 32], strides = [1, 1]} : vector<8x128xf32> to vector<8x32xf32>
    %61 = vector.extract_strided_slice %56 {offsets = [0, 96], sizes = [8, 32], strides = [1, 1]} : vector<8x128xf32> to vector<8x32xf32>
    %62 = arith.mulf %59, %10 : vector<8x32xf32>
    %63 = arith.mulf %58, %60 : vector<8x32xf32>
    %64 = arith.addf %62, %63 : vector<8x32xf32>
    %65 = math.tanh %64 : vector<8x32xf32>
    %66 = arith.mulf %61, %65 : vector<8x32xf32>
    %67 = vector.extract_strided_slice %9 {offsets = [16, 0], sizes = [8, 128], strides = [1, 1]} : vector<64x128xf32> to vector<8x128xf32>
    %cst_21 = arith.constant dense<0.000000e+00> : vector<8x128xf32>
    %68 = tpu.matmul %46, %2, %cst_21 {dimension_numbers = #tpu.dot_dimension_numbers<[1], [0], [0], [1], [0, 0, 1, 1], [], []>} : vector<8x32xf32>, vector<32x128xf32>, vector<8x128xf32> -> vector<8x128xf32>
    %69 = arith.addf %67, %68 : vector<8x128xf32>
    %70 = arith.negf %69 : vector<8x128xf32>
    %71 = math.exp %70 : vector<8x128xf32>
    %cst_22 = arith.constant 1.000000e+00 : f32
    %72 = vector.broadcast %cst_22 : f32 to vector<8x128xf32>
    %73 = arith.addf %72, %71 : vector<8x128xf32>
    %74 = arith.divf %72, %73 : vector<8x128xf32>
    %75 = math.tanh %69 : vector<8x128xf32>
    %76 = vector.extract_strided_slice %74 {offsets = [0, 0], sizes = [8, 32], strides = [1, 1]} : vector<8x128xf32> to vector<8x32xf32>
    %77 = vector.extract_strided_slice %74 {offsets = [0, 32], sizes = [8, 32], strides = [1, 1]} : vector<8x128xf32> to vector<8x32xf32>
    %78 = vector.extract_strided_slice %75 {offsets = [0, 64], sizes = [8, 32], strides = [1, 1]} : vector<8x128xf32> to vector<8x32xf32>
    %79 = vector.extract_strided_slice %74 {offsets = [0, 96], sizes = [8, 32], strides = [1, 1]} : vector<8x128xf32> to vector<8x32xf32>
    %80 = arith.mulf %77, %44 : vector<8x32xf32>
    %81 = arith.mulf %76, %78 : vector<8x32xf32>
    %82 = arith.addf %80, %81 : vector<8x32xf32>
    %83 = math.tanh %82 : vector<8x32xf32>
    %84 = arith.mulf %79, %83 : vector<8x32xf32>
    %cst_23 = arith.constant dense<0.000000e+00> : vector<8x128xf32>
    %85 = tpu.matmul %46, %1, %cst_23 {dimension_numbers = #tpu.dot_dimension_numbers<[1], [0], [0], [1], [0, 0, 1, 1], [], []>} : vector<8x32xf32>, vector<32x128xf32>, vector<8x128xf32> -> vector<8x128xf32>
    %86 = vector.broadcast %5 : vector<1x128xf32> to vector<8x128xf32>
    %87 = arith.addf %85, %86 : vector<8x128xf32>
    %cst_24 = arith.constant dense<0.000000e+00> : vector<8x128xf32>
    %88 = tpu.matmul %66, %3, %cst_24 {dimension_numbers = #tpu.dot_dimension_numbers<[1], [0], [0], [1], [0, 0, 1, 1], [], []>} : vector<8x32xf32>, vector<32x128xf32>, vector<8x128xf32> -> vector<8x128xf32>
    %89 = arith.addf %87, %88 : vector<8x128xf32>
    %90 = arith.negf %89 : vector<8x128xf32>
    %91 = math.exp %90 : vector<8x128xf32>
    %cst_25 = arith.constant 1.000000e+00 : f32
    %92 = vector.broadcast %cst_25 : f32 to vector<8x128xf32>
    %93 = arith.addf %92, %91 : vector<8x128xf32>
    %94 = arith.divf %92, %93 : vector<8x128xf32>
    %95 = math.tanh %89 : vector<8x128xf32>
    %96 = vector.extract_strided_slice %94 {offsets = [0, 0], sizes = [8, 32], strides = [1, 1]} : vector<8x128xf32> to vector<8x32xf32>
    %97 = vector.extract_strided_slice %94 {offsets = [0, 32], sizes = [8, 32], strides = [1, 1]} : vector<8x128xf32> to vector<8x32xf32>
    %98 = vector.extract_strided_slice %95 {offsets = [0, 64], sizes = [8, 32], strides = [1, 1]} : vector<8x128xf32> to vector<8x32xf32>
    %99 = vector.extract_strided_slice %94 {offsets = [0, 96], sizes = [8, 32], strides = [1, 1]} : vector<8x128xf32> to vector<8x32xf32>
    %100 = arith.mulf %97, %64 : vector<8x32xf32>
    %101 = arith.mulf %96, %98 : vector<8x32xf32>
    %102 = arith.addf %100, %101 : vector<8x32xf32>
    %103 = math.tanh %102 : vector<8x32xf32>
    %104 = arith.mulf %99, %103 : vector<8x32xf32>
    %105 = vector.extract_strided_slice %9 {offsets = [24, 0], sizes = [8, 128], strides = [1, 1]} : vector<64x128xf32> to vector<8x128xf32>
    %cst_26 = arith.constant dense<0.000000e+00> : vector<8x128xf32>
    %106 = tpu.matmul %84, %2, %cst_26 {dimension_numbers = #tpu.dot_dimension_numbers<[1], [0], [0], [1], [0, 0, 1, 1], [], []>} : vector<8x32xf32>, vector<32x128xf32>, vector<8x128xf32> -> vector<8x128xf32>
    %107 = arith.addf %105, %106 : vector<8x128xf32>
    %108 = arith.negf %107 : vector<8x128xf32>
    %109 = math.exp %108 : vector<8x128xf32>
    %cst_27 = arith.constant 1.000000e+00 : f32
    %110 = vector.broadcast %cst_27 : f32 to vector<8x128xf32>
    %111 = arith.addf %110, %109 : vector<8x128xf32>
    %112 = arith.divf %110, %111 : vector<8x128xf32>
    %113 = math.tanh %107 : vector<8x128xf32>
    %114 = vector.extract_strided_slice %112 {offsets = [0, 0], sizes = [8, 32], strides = [1, 1]} : vector<8x128xf32> to vector<8x32xf32>
    %115 = vector.extract_strided_slice %112 {offsets = [0, 32], sizes = [8, 32], strides = [1, 1]} : vector<8x128xf32> to vector<8x32xf32>
    %116 = vector.extract_strided_slice %113 {offsets = [0, 64], sizes = [8, 32], strides = [1, 1]} : vector<8x128xf32> to vector<8x32xf32>
    %117 = vector.extract_strided_slice %112 {offsets = [0, 96], sizes = [8, 32], strides = [1, 1]} : vector<8x128xf32> to vector<8x32xf32>
    %118 = arith.mulf %115, %82 : vector<8x32xf32>
    %119 = arith.mulf %114, %116 : vector<8x32xf32>
    %120 = arith.addf %118, %119 : vector<8x32xf32>
    %121 = math.tanh %120 : vector<8x32xf32>
    %122 = arith.mulf %117, %121 : vector<8x32xf32>
    %cst_28 = arith.constant dense<0.000000e+00> : vector<8x128xf32>
    %123 = tpu.matmul %84, %1, %cst_28 {dimension_numbers = #tpu.dot_dimension_numbers<[1], [0], [0], [1], [0, 0, 1, 1], [], []>} : vector<8x32xf32>, vector<32x128xf32>, vector<8x128xf32> -> vector<8x128xf32>
    %124 = vector.broadcast %5 : vector<1x128xf32> to vector<8x128xf32>
    %125 = arith.addf %123, %124 : vector<8x128xf32>
    %cst_29 = arith.constant dense<0.000000e+00> : vector<8x128xf32>
    %126 = tpu.matmul %104, %3, %cst_29 {dimension_numbers = #tpu.dot_dimension_numbers<[1], [0], [0], [1], [0, 0, 1, 1], [], []>} : vector<8x32xf32>, vector<32x128xf32>, vector<8x128xf32> -> vector<8x128xf32>
    %127 = arith.addf %125, %126 : vector<8x128xf32>
    %128 = arith.negf %127 : vector<8x128xf32>
    %129 = math.exp %128 : vector<8x128xf32>
    %cst_30 = arith.constant 1.000000e+00 : f32
    %130 = vector.broadcast %cst_30 : f32 to vector<8x128xf32>
    %131 = arith.addf %130, %129 : vector<8x128xf32>
    %132 = arith.divf %130, %131 : vector<8x128xf32>
    %133 = math.tanh %127 : vector<8x128xf32>
    %134 = vector.extract_strided_slice %132 {offsets = [0, 0], sizes = [8, 32], strides = [1, 1]} : vector<8x128xf32> to vector<8x32xf32>
    %135 = vector.extract_strided_slice %132 {offsets = [0, 32], sizes = [8, 32], strides = [1, 1]} : vector<8x128xf32> to vector<8x32xf32>
    %136 = vector.extract_strided_slice %133 {offsets = [0, 64], sizes = [8, 32], strides = [1, 1]} : vector<8x128xf32> to vector<8x32xf32>
    %137 = vector.extract_strided_slice %132 {offsets = [0, 96], sizes = [8, 32], strides = [1, 1]} : vector<8x128xf32> to vector<8x32xf32>
    %138 = arith.mulf %135, %102 : vector<8x32xf32>
    %139 = arith.mulf %134, %136 : vector<8x32xf32>
    %140 = arith.addf %138, %139 : vector<8x32xf32>
    %141 = math.tanh %140 : vector<8x32xf32>
    %142 = arith.mulf %137, %141 : vector<8x32xf32>
    %143 = vector.extract_strided_slice %9 {offsets = [32, 0], sizes = [8, 128], strides = [1, 1]} : vector<64x128xf32> to vector<8x128xf32>
    %cst_31 = arith.constant dense<0.000000e+00> : vector<8x128xf32>
    %144 = tpu.matmul %122, %2, %cst_31 {dimension_numbers = #tpu.dot_dimension_numbers<[1], [0], [0], [1], [0, 0, 1, 1], [], []>} : vector<8x32xf32>, vector<32x128xf32>, vector<8x128xf32> -> vector<8x128xf32>
    %145 = arith.addf %143, %144 : vector<8x128xf32>
    %146 = arith.negf %145 : vector<8x128xf32>
    %147 = math.exp %146 : vector<8x128xf32>
    %cst_32 = arith.constant 1.000000e+00 : f32
    %148 = vector.broadcast %cst_32 : f32 to vector<8x128xf32>
    %149 = arith.addf %148, %147 : vector<8x128xf32>
    %150 = arith.divf %148, %149 : vector<8x128xf32>
    %151 = math.tanh %145 : vector<8x128xf32>
    %152 = vector.extract_strided_slice %150 {offsets = [0, 0], sizes = [8, 32], strides = [1, 1]} : vector<8x128xf32> to vector<8x32xf32>
    %153 = vector.extract_strided_slice %150 {offsets = [0, 32], sizes = [8, 32], strides = [1, 1]} : vector<8x128xf32> to vector<8x32xf32>
    %154 = vector.extract_strided_slice %151 {offsets = [0, 64], sizes = [8, 32], strides = [1, 1]} : vector<8x128xf32> to vector<8x32xf32>
    %155 = vector.extract_strided_slice %150 {offsets = [0, 96], sizes = [8, 32], strides = [1, 1]} : vector<8x128xf32> to vector<8x32xf32>
    %156 = arith.mulf %153, %120 : vector<8x32xf32>
    %157 = arith.mulf %152, %154 : vector<8x32xf32>
    %158 = arith.addf %156, %157 : vector<8x32xf32>
    %159 = math.tanh %158 : vector<8x32xf32>
    %160 = arith.mulf %155, %159 : vector<8x32xf32>
    %cst_33 = arith.constant dense<0.000000e+00> : vector<8x128xf32>
    %161 = tpu.matmul %122, %1, %cst_33 {dimension_numbers = #tpu.dot_dimension_numbers<[1], [0], [0], [1], [0, 0, 1, 1], [], []>} : vector<8x32xf32>, vector<32x128xf32>, vector<8x128xf32> -> vector<8x128xf32>
    %162 = vector.broadcast %5 : vector<1x128xf32> to vector<8x128xf32>
    %163 = arith.addf %161, %162 : vector<8x128xf32>
    %cst_34 = arith.constant dense<0.000000e+00> : vector<8x128xf32>
    %164 = tpu.matmul %142, %3, %cst_34 {dimension_numbers = #tpu.dot_dimension_numbers<[1], [0], [0], [1], [0, 0, 1, 1], [], []>} : vector<8x32xf32>, vector<32x128xf32>, vector<8x128xf32> -> vector<8x128xf32>
    %165 = arith.addf %163, %164 : vector<8x128xf32>
    %166 = arith.negf %165 : vector<8x128xf32>
    %167 = math.exp %166 : vector<8x128xf32>
    %cst_35 = arith.constant 1.000000e+00 : f32
    %168 = vector.broadcast %cst_35 : f32 to vector<8x128xf32>
    %169 = arith.addf %168, %167 : vector<8x128xf32>
    %170 = arith.divf %168, %169 : vector<8x128xf32>
    %171 = math.tanh %165 : vector<8x128xf32>
    %172 = vector.extract_strided_slice %170 {offsets = [0, 0], sizes = [8, 32], strides = [1, 1]} : vector<8x128xf32> to vector<8x32xf32>
    %173 = vector.extract_strided_slice %170 {offsets = [0, 32], sizes = [8, 32], strides = [1, 1]} : vector<8x128xf32> to vector<8x32xf32>
    %174 = vector.extract_strided_slice %171 {offsets = [0, 64], sizes = [8, 32], strides = [1, 1]} : vector<8x128xf32> to vector<8x32xf32>
    %175 = vector.extract_strided_slice %170 {offsets = [0, 96], sizes = [8, 32], strides = [1, 1]} : vector<8x128xf32> to vector<8x32xf32>
    %176 = arith.mulf %173, %140 : vector<8x32xf32>
    %177 = arith.mulf %172, %174 : vector<8x32xf32>
    %178 = arith.addf %176, %177 : vector<8x32xf32>
    %179 = math.tanh %178 : vector<8x32xf32>
    %180 = arith.mulf %175, %179 : vector<8x32xf32>
    %181 = vector.extract_strided_slice %9 {offsets = [40, 0], sizes = [8, 128], strides = [1, 1]} : vector<64x128xf32> to vector<8x128xf32>
    %cst_36 = arith.constant dense<0.000000e+00> : vector<8x128xf32>
    %182 = tpu.matmul %160, %2, %cst_36 {dimension_numbers = #tpu.dot_dimension_numbers<[1], [0], [0], [1], [0, 0, 1, 1], [], []>} : vector<8x32xf32>, vector<32x128xf32>, vector<8x128xf32> -> vector<8x128xf32>
    %183 = arith.addf %181, %182 : vector<8x128xf32>
    %184 = arith.negf %183 : vector<8x128xf32>
    %185 = math.exp %184 : vector<8x128xf32>
    %cst_37 = arith.constant 1.000000e+00 : f32
    %186 = vector.broadcast %cst_37 : f32 to vector<8x128xf32>
    %187 = arith.addf %186, %185 : vector<8x128xf32>
    %188 = arith.divf %186, %187 : vector<8x128xf32>
    %189 = math.tanh %183 : vector<8x128xf32>
    %190 = vector.extract_strided_slice %188 {offsets = [0, 0], sizes = [8, 32], strides = [1, 1]} : vector<8x128xf32> to vector<8x32xf32>
    %191 = vector.extract_strided_slice %188 {offsets = [0, 32], sizes = [8, 32], strides = [1, 1]} : vector<8x128xf32> to vector<8x32xf32>
    %192 = vector.extract_strided_slice %189 {offsets = [0, 64], sizes = [8, 32], strides = [1, 1]} : vector<8x128xf32> to vector<8x32xf32>
    %193 = vector.extract_strided_slice %188 {offsets = [0, 96], sizes = [8, 32], strides = [1, 1]} : vector<8x128xf32> to vector<8x32xf32>
    %194 = arith.mulf %191, %158 : vector<8x32xf32>
    %195 = arith.mulf %190, %192 : vector<8x32xf32>
    %196 = arith.addf %194, %195 : vector<8x32xf32>
    %197 = math.tanh %196 : vector<8x32xf32>
    %198 = arith.mulf %193, %197 : vector<8x32xf32>
    %cst_38 = arith.constant dense<0.000000e+00> : vector<8x128xf32>
    %199 = tpu.matmul %160, %1, %cst_38 {dimension_numbers = #tpu.dot_dimension_numbers<[1], [0], [0], [1], [0, 0, 1, 1], [], []>} : vector<8x32xf32>, vector<32x128xf32>, vector<8x128xf32> -> vector<8x128xf32>
    %200 = vector.broadcast %5 : vector<1x128xf32> to vector<8x128xf32>
    %201 = arith.addf %199, %200 : vector<8x128xf32>
    %cst_39 = arith.constant dense<0.000000e+00> : vector<8x128xf32>
    %202 = tpu.matmul %180, %3, %cst_39 {dimension_numbers = #tpu.dot_dimension_numbers<[1], [0], [0], [1], [0, 0, 1, 1], [], []>} : vector<8x32xf32>, vector<32x128xf32>, vector<8x128xf32> -> vector<8x128xf32>
    %203 = arith.addf %201, %202 : vector<8x128xf32>
    %204 = arith.negf %203 : vector<8x128xf32>
    %205 = math.exp %204 : vector<8x128xf32>
    %cst_40 = arith.constant 1.000000e+00 : f32
    %206 = vector.broadcast %cst_40 : f32 to vector<8x128xf32>
    %207 = arith.addf %206, %205 : vector<8x128xf32>
    %208 = arith.divf %206, %207 : vector<8x128xf32>
    %209 = math.tanh %203 : vector<8x128xf32>
    %210 = vector.extract_strided_slice %208 {offsets = [0, 0], sizes = [8, 32], strides = [1, 1]} : vector<8x128xf32> to vector<8x32xf32>
    %211 = vector.extract_strided_slice %208 {offsets = [0, 32], sizes = [8, 32], strides = [1, 1]} : vector<8x128xf32> to vector<8x32xf32>
    %212 = vector.extract_strided_slice %209 {offsets = [0, 64], sizes = [8, 32], strides = [1, 1]} : vector<8x128xf32> to vector<8x32xf32>
    %213 = vector.extract_strided_slice %208 {offsets = [0, 96], sizes = [8, 32], strides = [1, 1]} : vector<8x128xf32> to vector<8x32xf32>
    %214 = arith.mulf %211, %178 : vector<8x32xf32>
    %215 = arith.mulf %210, %212 : vector<8x32xf32>
    %216 = arith.addf %214, %215 : vector<8x32xf32>
    %217 = math.tanh %216 : vector<8x32xf32>
    %218 = arith.mulf %213, %217 : vector<8x32xf32>
    %219 = vector.extract_strided_slice %9 {offsets = [48, 0], sizes = [8, 128], strides = [1, 1]} : vector<64x128xf32> to vector<8x128xf32>
    %cst_41 = arith.constant dense<0.000000e+00> : vector<8x128xf32>
    %220 = tpu.matmul %198, %2, %cst_41 {dimension_numbers = #tpu.dot_dimension_numbers<[1], [0], [0], [1], [0, 0, 1, 1], [], []>} : vector<8x32xf32>, vector<32x128xf32>, vector<8x128xf32> -> vector<8x128xf32>
    %221 = arith.addf %219, %220 : vector<8x128xf32>
    %222 = arith.negf %221 : vector<8x128xf32>
    %223 = math.exp %222 : vector<8x128xf32>
    %cst_42 = arith.constant 1.000000e+00 : f32
    %224 = vector.broadcast %cst_42 : f32 to vector<8x128xf32>
    %225 = arith.addf %224, %223 : vector<8x128xf32>
    %226 = arith.divf %224, %225 : vector<8x128xf32>
    %227 = math.tanh %221 : vector<8x128xf32>
    %228 = vector.extract_strided_slice %226 {offsets = [0, 0], sizes = [8, 32], strides = [1, 1]} : vector<8x128xf32> to vector<8x32xf32>
    %229 = vector.extract_strided_slice %226 {offsets = [0, 32], sizes = [8, 32], strides = [1, 1]} : vector<8x128xf32> to vector<8x32xf32>
    %230 = vector.extract_strided_slice %227 {offsets = [0, 64], sizes = [8, 32], strides = [1, 1]} : vector<8x128xf32> to vector<8x32xf32>
    %231 = vector.extract_strided_slice %226 {offsets = [0, 96], sizes = [8, 32], strides = [1, 1]} : vector<8x128xf32> to vector<8x32xf32>
    %232 = arith.mulf %229, %196 : vector<8x32xf32>
    %233 = arith.mulf %228, %230 : vector<8x32xf32>
    %234 = arith.addf %232, %233 : vector<8x32xf32>
    %235 = math.tanh %234 : vector<8x32xf32>
    %236 = arith.mulf %231, %235 : vector<8x32xf32>
    %cst_43 = arith.constant dense<0.000000e+00> : vector<8x128xf32>
    %237 = tpu.matmul %198, %1, %cst_43 {dimension_numbers = #tpu.dot_dimension_numbers<[1], [0], [0], [1], [0, 0, 1, 1], [], []>} : vector<8x32xf32>, vector<32x128xf32>, vector<8x128xf32> -> vector<8x128xf32>
    %238 = vector.broadcast %5 : vector<1x128xf32> to vector<8x128xf32>
    %239 = arith.addf %237, %238 : vector<8x128xf32>
    %cst_44 = arith.constant dense<0.000000e+00> : vector<8x128xf32>
    %240 = tpu.matmul %218, %3, %cst_44 {dimension_numbers = #tpu.dot_dimension_numbers<[1], [0], [0], [1], [0, 0, 1, 1], [], []>} : vector<8x32xf32>, vector<32x128xf32>, vector<8x128xf32> -> vector<8x128xf32>
    %241 = arith.addf %239, %240 : vector<8x128xf32>
    %242 = arith.negf %241 : vector<8x128xf32>
    %243 = math.exp %242 : vector<8x128xf32>
    %cst_45 = arith.constant 1.000000e+00 : f32
    %244 = vector.broadcast %cst_45 : f32 to vector<8x128xf32>
    %245 = arith.addf %244, %243 : vector<8x128xf32>
    %246 = arith.divf %244, %245 : vector<8x128xf32>
    %247 = math.tanh %241 : vector<8x128xf32>
    %248 = vector.extract_strided_slice %246 {offsets = [0, 0], sizes = [8, 32], strides = [1, 1]} : vector<8x128xf32> to vector<8x32xf32>
    %249 = vector.extract_strided_slice %246 {offsets = [0, 32], sizes = [8, 32], strides = [1, 1]} : vector<8x128xf32> to vector<8x32xf32>
    %250 = vector.extract_strided_slice %247 {offsets = [0, 64], sizes = [8, 32], strides = [1, 1]} : vector<8x128xf32> to vector<8x32xf32>
    %251 = vector.extract_strided_slice %246 {offsets = [0, 96], sizes = [8, 32], strides = [1, 1]} : vector<8x128xf32> to vector<8x32xf32>
    %252 = arith.mulf %249, %216 : vector<8x32xf32>
    %253 = arith.mulf %248, %250 : vector<8x32xf32>
    %254 = arith.addf %252, %253 : vector<8x32xf32>
    %255 = math.tanh %254 : vector<8x32xf32>
    %256 = arith.mulf %251, %255 : vector<8x32xf32>
    %257 = vector.extract_strided_slice %9 {offsets = [56, 0], sizes = [8, 128], strides = [1, 1]} : vector<64x128xf32> to vector<8x128xf32>
    %cst_46 = arith.constant dense<0.000000e+00> : vector<8x128xf32>
    %258 = tpu.matmul %236, %2, %cst_46 {dimension_numbers = #tpu.dot_dimension_numbers<[1], [0], [0], [1], [0, 0, 1, 1], [], []>} : vector<8x32xf32>, vector<32x128xf32>, vector<8x128xf32> -> vector<8x128xf32>
    %259 = arith.addf %257, %258 : vector<8x128xf32>
    %260 = arith.negf %259 : vector<8x128xf32>
    %261 = math.exp %260 : vector<8x128xf32>
    %cst_47 = arith.constant 1.000000e+00 : f32
    %262 = vector.broadcast %cst_47 : f32 to vector<8x128xf32>
    %263 = arith.addf %262, %261 : vector<8x128xf32>
    %264 = arith.divf %262, %263 : vector<8x128xf32>
    %265 = math.tanh %259 : vector<8x128xf32>
    %266 = vector.extract_strided_slice %264 {offsets = [0, 0], sizes = [8, 32], strides = [1, 1]} : vector<8x128xf32> to vector<8x32xf32>
    %267 = vector.extract_strided_slice %264 {offsets = [0, 32], sizes = [8, 32], strides = [1, 1]} : vector<8x128xf32> to vector<8x32xf32>
    %268 = vector.extract_strided_slice %265 {offsets = [0, 64], sizes = [8, 32], strides = [1, 1]} : vector<8x128xf32> to vector<8x32xf32>
    %269 = vector.extract_strided_slice %264 {offsets = [0, 96], sizes = [8, 32], strides = [1, 1]} : vector<8x128xf32> to vector<8x32xf32>
    %270 = arith.mulf %267, %234 : vector<8x32xf32>
    %271 = arith.mulf %266, %268 : vector<8x32xf32>
    %272 = arith.addf %270, %271 : vector<8x32xf32>
    %273 = math.tanh %272 : vector<8x32xf32>
    %274 = arith.mulf %269, %273 : vector<8x32xf32>
    %cst_48 = arith.constant dense<0.000000e+00> : vector<8x128xf32>
    %275 = tpu.matmul %236, %1, %cst_48 {dimension_numbers = #tpu.dot_dimension_numbers<[1], [0], [0], [1], [0, 0, 1, 1], [], []>} : vector<8x32xf32>, vector<32x128xf32>, vector<8x128xf32> -> vector<8x128xf32>
    %276 = vector.broadcast %5 : vector<1x128xf32> to vector<8x128xf32>
    %277 = arith.addf %275, %276 : vector<8x128xf32>
    %cst_49 = arith.constant dense<0.000000e+00> : vector<8x128xf32>
    %278 = tpu.matmul %256, %3, %cst_49 {dimension_numbers = #tpu.dot_dimension_numbers<[1], [0], [0], [1], [0, 0, 1, 1], [], []>} : vector<8x32xf32>, vector<32x128xf32>, vector<8x128xf32> -> vector<8x128xf32>
    %279 = arith.addf %277, %278 : vector<8x128xf32>
    %280 = arith.negf %279 : vector<8x128xf32>
    %281 = math.exp %280 : vector<8x128xf32>
    %cst_50 = arith.constant 1.000000e+00 : f32
    %282 = vector.broadcast %cst_50 : f32 to vector<8x128xf32>
    %283 = arith.addf %282, %281 : vector<8x128xf32>
    %284 = arith.divf %282, %283 : vector<8x128xf32>
    %285 = math.tanh %279 : vector<8x128xf32>
    %286 = vector.extract_strided_slice %284 {offsets = [0, 0], sizes = [8, 32], strides = [1, 1]} : vector<8x128xf32> to vector<8x32xf32>
    %287 = vector.extract_strided_slice %284 {offsets = [0, 32], sizes = [8, 32], strides = [1, 1]} : vector<8x128xf32> to vector<8x32xf32>
    %288 = vector.extract_strided_slice %285 {offsets = [0, 64], sizes = [8, 32], strides = [1, 1]} : vector<8x128xf32> to vector<8x32xf32>
    %289 = vector.extract_strided_slice %284 {offsets = [0, 96], sizes = [8, 32], strides = [1, 1]} : vector<8x128xf32> to vector<8x32xf32>
    %290 = arith.mulf %287, %254 : vector<8x32xf32>
    %291 = arith.mulf %286, %288 : vector<8x32xf32>
    %292 = arith.addf %290, %291 : vector<8x32xf32>
    %293 = math.tanh %292 : vector<8x32xf32>
    %294 = arith.mulf %289, %293 : vector<8x32xf32>
    %cst_51 = arith.constant dense<0.000000e+00> : vector<8x128xf32>
    %295 = tpu.matmul %274, %1, %cst_51 {dimension_numbers = #tpu.dot_dimension_numbers<[1], [0], [0], [1], [0, 0, 1, 1], [], []>} : vector<8x32xf32>, vector<32x128xf32>, vector<8x128xf32> -> vector<8x128xf32>
    %296 = vector.broadcast %5 : vector<1x128xf32> to vector<8x128xf32>
    %297 = arith.addf %295, %296 : vector<8x128xf32>
    %cst_52 = arith.constant dense<0.000000e+00> : vector<8x128xf32>
    %298 = tpu.matmul %294, %3, %cst_52 {dimension_numbers = #tpu.dot_dimension_numbers<[1], [0], [0], [1], [0, 0, 1, 1], [], []>} : vector<8x32xf32>, vector<32x128xf32>, vector<8x128xf32> -> vector<8x128xf32>
    %299 = arith.addf %297, %298 : vector<8x128xf32>
    %300 = arith.negf %299 : vector<8x128xf32>
    %301 = math.exp %300 : vector<8x128xf32>
    %cst_53 = arith.constant 1.000000e+00 : f32
    %302 = vector.broadcast %cst_53 : f32 to vector<8x128xf32>
    %303 = arith.addf %302, %301 : vector<8x128xf32>
    %304 = arith.divf %302, %303 : vector<8x128xf32>
    %305 = math.tanh %299 : vector<8x128xf32>
    %306 = vector.extract_strided_slice %304 {offsets = [0, 0], sizes = [8, 32], strides = [1, 1]} : vector<8x128xf32> to vector<8x32xf32>
    %307 = vector.extract_strided_slice %304 {offsets = [0, 32], sizes = [8, 32], strides = [1, 1]} : vector<8x128xf32> to vector<8x32xf32>
    %308 = vector.extract_strided_slice %305 {offsets = [0, 64], sizes = [8, 32], strides = [1, 1]} : vector<8x128xf32> to vector<8x32xf32>
    %309 = vector.extract_strided_slice %304 {offsets = [0, 96], sizes = [8, 32], strides = [1, 1]} : vector<8x128xf32> to vector<8x32xf32>
    %310 = arith.mulf %307, %292 : vector<8x32xf32>
    %311 = arith.mulf %306, %308 : vector<8x32xf32>
    %312 = arith.addf %310, %311 : vector<8x32xf32>
    %313 = math.tanh %312 : vector<8x32xf32>
    %314 = arith.mulf %309, %313 : vector<8x32xf32>
    %315 = tpu.concatenate %66, %104, %142, %180, %218, %256, %294, %314 in 0 : vector<8x32xf32>, vector<8x32xf32>, vector<8x32xf32>, vector<8x32xf32>, vector<8x32xf32>, vector<8x32xf32>, vector<8x32xf32>, vector<8x32xf32> -> vector<64x32xf32>
    %c0_54 = arith.constant 0 : index
    %c0_55 = arith.constant 0 : index
    %316 = vector.load %arg1[%c0_54, %c0_55] : memref<64x1xf32, #tpu.memory_space<vmem>>, vector<64x1xf32>
    %317 = vector.broadcast %316 : vector<64x1xf32> to vector<64x32xf32>
    %318 = arith.mulf %315, %317 : vector<64x32xf32>
    %cst_56 = arith.constant 0.000000e+00 : f32
    %319 = vector.broadcast %cst_56 : f32 to vector<64x32xf32>
    %320 = arith.maximumf %318, %319 : vector<64x32xf32>
    %c0_57 = arith.constant 0 : index
    %c0_58 = arith.constant 0 : index
    %321 = vector.load %arg8[%c0_57, %c0_58] : memref<32x32xf32, #tpu.memory_space<vmem>>, vector<32x32xf32>
    %cst_59 = arith.constant dense<0.000000e+00> : vector<64x32xf32>
    %322 = tpu.matmul %320, %321, %cst_59 {dimension_numbers = #tpu.dot_dimension_numbers<[1], [0], [0], [1], [0, 0, 1, 1], [], []>} : vector<64x32xf32>, vector<32x32xf32>, vector<64x32xf32> -> vector<64x32xf32>
    %c0_60 = arith.constant 0 : index
    %c0_61 = arith.constant 0 : index
    %323 = vector.load %arg9[%c0_60, %c0_61] : memref<1x32xf32, #tpu.memory_space<vmem>>, vector<1x32xf32>
    %324 = vector.broadcast %323 : vector<1x32xf32> to vector<64x32xf32>
    %325 = arith.addf %322, %324 : vector<64x32xf32>
    %cst_62 = arith.constant 0.000000e+00 : f32
    %326 = vector.broadcast %cst_62 : f32 to vector<64x32xf32>
    %327 = arith.maximumf %325, %326 : vector<64x32xf32>
    %c0_63 = arith.constant 0 : index
    %c0_64 = arith.constant 0 : index
    %328 = vector.load %arg10[%c0_63, %c0_64] : memref<32x16xf32, #tpu.memory_space<vmem>>, vector<32x16xf32>
    %cst_65 = arith.constant dense<0.000000e+00> : vector<64x16xf32>
    %329 = tpu.matmul %327, %328, %cst_65 {dimension_numbers = #tpu.dot_dimension_numbers<[1], [0], [0], [1], [0, 0, 1, 1], [], []>} : vector<64x32xf32>, vector<32x16xf32>, vector<64x16xf32> -> vector<64x16xf32>
    %c0_66 = arith.constant 0 : index
    %c0_67 = arith.constant 0 : index
    %330 = vector.load %arg11[%c0_66, %c0_67] : memref<1x16xf32, #tpu.memory_space<vmem>>, vector<1x16xf32>
    %331 = vector.broadcast %330 : vector<1x16xf32> to vector<64x16xf32>
    %332 = arith.addf %329, %331 : vector<64x16xf32>
    %c0_68 = arith.constant 0 : index
    %c0_69 = arith.constant 0 : index
    %333 = vector.load %arg12[%c0_68, %c0_69] : memref<64x16xf32, #tpu.memory_space<vmem>>, vector<64x16xf32>
    tpu.vector_store %arg12[%c0_68, %c0_69], %332 {strides = array<i32>} : memref<64x16xf32, #tpu.memory_space<vmem>>, vector<64x16xf32>,
    return
  }
}

</mosaic_0001>

<llo_original>
// kernel: rnn_forward.1
$region0: #{rnn_forward.1}
  #allocation0 [shape = 'u32[]', space=smem, size = 0x4, offset = 0x4, fixed_abs, tag = 'smem constant byte address 0x4 - core index']
  #allocation1 [shape = 'u32[72,128]{1,0:T(1,128)}', space=vmem, size = 0x9000, scoped, tag = 'internal scratch']
  %s0 = inlined_call_operand.vmem [shape: f32[64,16], index: 0, kind: input, shape index: {}]
  %s1 = inlined_call_operand.vmem [shape: f32[64,1], index: 1, kind: input, shape index: {}]
  %s2 = inlined_call_operand.vmem [shape: f32[16,128], index: 2, kind: input, shape index: {}]
  %s3 = inlined_call_operand.vmem [shape: f32[32,128], index: 3, kind: input, shape index: {}]
  %s4 = inlined_call_operand.vmem [shape: f32[1,128], index: 4, kind: input, shape index: {}]
  %s5 = inlined_call_operand.vmem [shape: f32[32,128], index: 5, kind: input, shape index: {}]
  %s6 = inlined_call_operand.vmem [shape: f32[32,128], index: 6, kind: input, shape index: {}]
  %s7 = inlined_call_operand.vmem [shape: f32[1,128], index: 7, kind: input, shape index: {}]
  %s8 = inlined_call_operand.vmem [shape: f32[32,32], index: 8, kind: input, shape index: {}]
  %s9 = inlined_call_operand.vmem [shape: f32[1,32], index: 9, kind: input, shape index: {}]
  %s10 = inlined_call_operand.vmem [shape: f32[32,16], index: 10, kind: input, shape index: {}]
  %s11 = inlined_call_operand.vmem [shape: f32[1,16], index: 11, kind: input, shape index: {}]
  %s12 = inlined_call_operand.vmem [shape: f32[64,16], index: 12, kind: output, shape index: {}]
  %s13 = sld [smem:[#allocation0]]
  $region58: #{rnn_forward.1} parent=0
    _
  %s15 = ssub.s32 1, %s13
  %s16 = scalar_select 0, %s15, %s13
  // Predicated region
  $region2: #{rnn_forward.1} parent=0 // pred_check
    _
  $region3: #{rnn_forward.1} parent=0 // pred_check_branch
    %18 = sbr.rel (0) target = $region5
  $region4: #{rnn_forward.1} parent=0 // pred_region
    _
  $region5: #{rnn_forward.1} parent=0 // pred_fallthru
    _
  // Predicated region
  $region6: #{rnn_forward.1} parent=0 // pred_check
    _
  $region7: #{rnn_forward.1} parent=0 // pred_check_branch
    %20 = sbr.rel (0) target = $region9
  $region8: #{rnn_forward.1} parent=0 // pred_region
    _
  $region9: #{rnn_forward.1} parent=0 // pred_fallthru
    _
  // Predicated region
  $region10: #{rnn_forward.1} parent=0 // pred_check
    _
  $region11: #{rnn_forward.1} parent=0 // pred_check_branch
    %22 = sbr.rel (0) target = $region13
  $region12: #{rnn_forward.1} parent=0 // pred_region
    _
  $region13: #{rnn_forward.1} parent=0 // pred_fallthru
    _
  // Predicated region
  $region14: #{rnn_forward.1} parent=0 // pred_check
    _
  $region15: #{rnn_forward.1} parent=0 // pred_check_branch
    %24 = sbr.rel (0) target = $region17
  $region16: #{rnn_forward.1} parent=0 // pred_region
    _
  $region17: #{rnn_forward.1} parent=0 // pred_fallthru
    _
  // Predicated region
  $region18: #{rnn_forward.1} parent=0 // pred_check
    _
  $region19: #{rnn_forward.1} parent=0 // pred_check_branch
    %26 = sbr.rel (0) target = $region21
  $region20: #{rnn_forward.1} parent=0 // pred_region
    _
  $region21: #{rnn_forward.1} parent=0 // pred_fallthru
    _
  // Predicated region
  $region22: #{rnn_forward.1} parent=0 // pred_check
    _
  $region23: #{rnn_forward.1} parent=0 // pred_check_branch
    %28 = sbr.rel (0) target = $region25
  $region24: #{rnn_forward.1} parent=0 // pred_region
    _
  $region25: #{rnn_forward.1} parent=0 // pred_fallthru
    _
  // Predicated region
  $region26: #{rnn_forward.1} parent=0 // pred_check
    _
  $region27: #{rnn_forward.1} parent=0 // pred_check_branch
    %30 = sbr.rel (0) target = $region29
  $region28: #{rnn_forward.1} parent=0 // pred_region
    _
  $region29: #{rnn_forward.1} parent=0 // pred_fallthru
    _
  // Predicated region
  $region30: #{rnn_forward.1} parent=0 // pred_check
    _
  $region31: #{rnn_forward.1} parent=0 // pred_check_branch
    %32 = sbr.rel (0) target = $region33
  $region32: #{rnn_forward.1} parent=0 // pred_region
    _
  $region33: #{rnn_forward.1} parent=0 // pred_fallthru
    _
  // Predicated region
  $region34: #{rnn_forward.1} parent=0 // pred_check
    _
  $region35: #{rnn_forward.1} parent=0 // pred_check_branch
    %34 = sbr.rel (0) target = $region37
  $region36: #{rnn_forward.1} parent=0 // pred_region
    _
  $region37: #{rnn_forward.1} parent=0 // pred_fallthru
    _
  // Predicated region
  $region38: #{rnn_forward.1} parent=0 // pred_check
    _
  $region39: #{rnn_forward.1} parent=0 // pred_check_branch
    %36 = sbr.rel (0) target = $region41
  $region40: #{rnn_forward.1} parent=0 // pred_region
    _
  $region41: #{rnn_forward.1} parent=0 // pred_fallthru
    _
  // Predicated region
  $region42: #{rnn_forward.1} parent=0 // pred_check
    _
  $region43: #{rnn_forward.1} parent=0 // pred_check_branch
    %38 = sbr.rel (0) target = $region45
  $region44: #{rnn_forward.1} parent=0 // pred_region
    _
  $region45: #{rnn_forward.1} parent=0 // pred_fallthru
    _
  // Predicated region
  $region46: #{rnn_forward.1} parent=0 // pred_check
    _
  $region47: #{rnn_forward.1} parent=0 // pred_check_branch
    %40 = sbr.rel (0) target = $region49
  $region48: #{rnn_forward.1} parent=0 // pred_region
    _
  $region49: #{rnn_forward.1} parent=0 // pred_fallthru
    _
  %v41 = vld [vmem:[%s2] sm:$0xff]
  %v42 = vld [vmem:[%s2 + $0x8] sm:$0xff]
  %v43 = vld [vmem:[%s5] sm:$0xff]
  %v44 = vld [vmem:[%s5 + $0x8] sm:$0xff]
  %v45 = vld [vmem:[%s5 + $0x10] sm:$0xff]
  %v46 = vld [vmem:[%s5 + $0x18] sm:$0xff]
  %v47 = vld [vmem:[%s3] sm:$0xff]
  %v48 = vld [vmem:[%s3 + $0x8] sm:$0xff]
  %v49 = vld [vmem:[%s3 + $0x10] sm:$0xff]
  %v50 = vld [vmem:[%s3 + $0x18] sm:$0xff]
  %v51 = vld [vmem:[%s6] sm:$0xff]
  %v52 = vld [vmem:[%s6 + $0x8] sm:$0xff]
  %v53 = vld [vmem:[%s6 + $0x10] sm:$0xff]
  %v54 = vld [vmem:[%s6 + $0x18] sm:$0xff]
  %v55 = vld [vmem:[%s4] sm:$0x1]
  %v56 = vld [vmem:[%s7] sm:$0x1]
  %v57 = vld [vmem:[%s0] sm:$0xff]
  %v58 = vld [vmem:[%s0 + $0x8] sm:$0xff]
  %v59 = vld [vmem:[%s0 + $0x10] sm:$0xff]
  %v60 = vld [vmem:[%s0 + $0x18] sm:$0xff]
  %v61 = vld [vmem:[%s0 + $0x20] sm:$0xff]
  %v62 = vld [vmem:[%s0 + $0x28] sm:$0xff]
  %v63 = vld [vmem:[%s0 + $0x30] sm:$0xff]
  %v64 = vld [vmem:[%s0 + $0x38] sm:$0xff]
  %v66 = vperm.slane %v55, 0
  %vm68 = vcmask 130048
  %v70 = vsel %vm68, %v57, 0
  %v73 = vsel %vm68, %v58, 0
  %v76 = vsel %vm68, %v59, 0
  %v79 = vsel %vm68, %v60, 0
  %v82 = vsel %vm68, %v61, 0
  %v85 = vsel %vm68, %v62, 0
  %v88 = vsel %vm68, %v63, 0
  %v91 = vsel %vm68, %v64, 0
  %93 = vmatpush.msra.mxu0 0.0
  %94 = vmatpush.msra.mxu0 0.0
  %95 = vmatpush.msra.mxu0 0.0
  %96 = vmatpush.msra.mxu0 0.0
  %97 = vmatpush.msra.mxu0 0.0
  %98 = vmatpush.msra.mxu0 0.0
  %99 = vmatpush.msra.mxu0 0.0
  %100 = vmatpush.msra.mxu0 0.0
  %101 = vmatpush.msra.mxu0 0.0
  %102 = vmatpush.msra.mxu0 0.0
  %103 = vmatpush.msra.mxu0 0.0
  %104 = vmatpush.msra.mxu0 0.0
  %105 = vmatpush.msra.mxu0 0.0
  %106 = vmatpush.msra.mxu0 0.0
  %107 = vmatpush.msra.mxu0 %v42
  %108 = vmatpush.msra.mxu0 %v41
  %109 = vmatmul.f32.gmra.mxu0 %v70
  %v110 = vpop.f32.mrf.mxu0
  %v111 = vadd.f32 %v66, %v110
  %112 = vmatmul.f32.gmra.mxu0 %v73
  %v113 = vpop.f32.mrf.mxu0
  %v114 = vadd.f32 %v66, %v113
  %115 = vmatmul.f32.gmra.mxu0 %v76
  %v116 = vpop.f32.mrf.mxu0
  %v117 = vadd.f32 %v66, %v116
  %118 = vmatmul.f32.gmra.mxu0 %v79
  %v119 = vpop.f32.mrf.mxu0
  %v120 = vadd.f32 %v66, %v119
  %121 = vmatmul.f32.gmra.mxu0 %v82
  %v122 = vpop.f32.mrf.mxu0
  %v123 = vadd.f32 %v66, %v122
  %124 = vmatmul.f32.gmra.mxu0 %v85
  %v125 = vpop.f32.mrf.mxu0
  %v126 = vadd.f32 %v66, %v125
  %127 = vmatmul.f32.gmra.mxu0 %v88
  %v128 = vpop.f32.mrf.mxu0
  %v129 = vadd.f32 %v66, %v128
  %130 = vmatmul.f32.gmra.mxu0 %v91
  %v131 = vpop.f32.mrf.mxu0
  %v132 = vadd.f32 %v66, %v131
  %133 = vdwg.mxu0
  %vm134 = vcmask 261120
  %v136 = vsel %vm134, 0.0, 0
  %138 = vmatpush.msra.mxu0 0.0
  %139 = vmatpush.msra.mxu0 0.0
  %140 = vmatpush.msra.mxu0 0.0
  %141 = vmatpush.msra.mxu0 0.0
  %142 = vmatpush.msra.mxu0 0.0
  %143 = vmatpush.msra.mxu0 0.0
  %144 = vmatpush.msra.mxu0 0.0
  %145 = vmatpush.msra.mxu0 0.0
  %146 = vmatpush.msra.mxu0 0.0
  %147 = vmatpush.msra.mxu0 0.0
  %148 = vmatpush.msra.mxu0 0.0
  %149 = vmatpush.msra.mxu0 0.0
  %150 = vmatpush.msra.mxu0 %v50
  %151 = vmatpush.msra.mxu0 %v49
  %152 = vmatpush.msra.mxu0 %v48
  %153 = vmatpush.msra.mxu0 %v47
  %154 = vmatmul.f32.gmra.mxu0 %v136
  %v155 = vpop.f32.mrf.mxu0
  %v156 = vadd.f32 0.0, %v155
  %157 = vdwg.mxu0
  %v158 = vadd.f32 %v111, %v156
  %v159 = vxor.u32 %v158, 2147483648
  %v160 = vmul.f32 %v159, 1.442695
  %v161 = vpow.pop %v160
  %v162 = vadd.f32 %v161, 1.0
  %v163 = vrcp.pop %v162
  %v164 = vmul.f32 %v162, %v163
  %v165 = vsub.f32 1.0, %v164
  %v166 = vmul.f32 %v163, %v165
  %v167 = vadd.f32 %v163, %v166
  %vm168 = vweird.f32 %v162
  %vm169 = vweird.f32 %v163
  %vm170 = vmor %vm168, %vm169
  %v171 = vsel %vm170, %v163, %v167
  %v172 = vand.u32 2147483647, %v162
  %vm173 = vcmp.eq.f32.partialorder %v172, 8.507059e+37
  %v174 = vand.u32 %v162, 2147483648
  %v175 = vor.u32 1.1754944e-38, %v174
  %v176 = vsel %vm173, %v175, %v171
  %v177 = vmul.f32 1.0, %v176
  %v178 = vtanh.pop %v158
  %v179 = vmul.f32 %v177, 0.0
  %181 = vrot.lane.b32.xlu0 %v178, 64
  %v182 = vpop.permute.xlu0 %181
  %v184 = vmul.f32 %v177, %v182
  %186 = vrot.lane.b32.xlu0 %v184, 32
  %v187 = vpop.permute.xlu0 %186
  %v189 = vadd.f32 %v179, %v187
  %v190 = vtanh.pop %v189
  %192 = vrot.lane.b32.xlu0 %v190, 64
  %v193 = vpop.permute.xlu0 %192
  %v195 = vmul.f32 %v177, %v193
  %197 = vrot.lane.b32.xlu0 %v195, 32
  %v198 = vpop.permute.xlu0 %197
  %v199 = vsel %vm134, %v198, 0
  %201 = vmatpush.msra.mxu0 0.0
  %202 = vmatpush.msra.mxu0 0.0
  %203 = vmatpush.msra.mxu0 0.0
  %204 = vmatpush.msra.mxu0 0.0
  %205 = vmatpush.msra.mxu0 0.0
  %206 = vmatpush.msra.mxu0 0.0
  %207 = vmatpush.msra.mxu0 0.0
  %208 = vmatpush.msra.mxu0 0.0
  %209 = vmatpush.msra.mxu0 0.0
  %210 = vmatpush.msra.mxu0 0.0
  %211 = vmatpush.msra.mxu0 0.0
  %212 = vmatpush.msra.mxu0 0.0
  %213 = vmatpush.msra.mxu0 %v50
  %214 = vmatpush.msra.mxu0 %v49
  %215 = vmatpush.msra.mxu0 %v48
  %216 = vmatpush.msra.mxu0 %v47
  %217 = vmatmul.f32.gmra.mxu0 %v199
  %v218 = vpop.f32.mrf.mxu0
  %v219 = vadd.f32 0.0, %v218
  %220 = vdwg.mxu0
  %v221 = vadd.f32 %v114, %v219
  %v222 = vxor.u32 %v221, 2147483648
  %v223 = vmul.f32 %v222, 1.442695
  %v224 = vpow.pop %v223
  %v225 = vadd.f32 %v224, 1.0
  %v226 = vrcp.pop %v225
  %v227 = vmul.f32 %v225, %v226
  %v228 = vsub.f32 1.0, %v227
  %v229 = vmul.f32 %v226, %v228
  %v230 = vadd.f32 %v226, %v229
  %vm231 = vweird.f32 %v225
  %vm232 = vweird.f32 %v226
  %vm233 = vmor %vm231, %vm232
  %v234 = vsel %vm233, %v226, %v230
  %v235 = vand.u32 2147483647, %v225
  %vm236 = vcmp.eq.f32.partialorder %v235, 8.507059e+37
  %v237 = vand.u32 %v225, 2147483648
  %v238 = vor.u32 1.1754944e-38, %v237
  %v239 = vsel %vm236, %v238, %v234
  %v240 = vmul.f32 1.0, %v239
  %v241 = vtanh.pop %v221
  %v242 = vmul.f32 %v240, %v189
  %244 = vrot.lane.b32.xlu0 %v241, 64
  %v245 = vpop.permute.xlu0 %244
  %v247 = vmul.f32 %v240, %v245
  %249 = vrot.lane.b32.xlu0 %v247, 32
  %v250 = vpop.permute.xlu0 %249
  %v252 = vadd.f32 %v242, %v250
  %v253 = vtanh.pop %v252
  %255 = vrot.lane.b32.xlu0 %v253, 64
  %v256 = vpop.permute.xlu0 %255
  %v258 = vmul.f32 %v240, %v256
  %v260 = vperm.slane %v56, 0
  %262 = vmatpush.msra.mxu0 0.0
  %263 = vmatpush.msra.mxu0 0.0
  %264 = vmatpush.msra.mxu0 0.0
  %265 = vmatpush.msra.mxu0 0.0
  %266 = vmatpush.msra.mxu0 0.0
  %267 = vmatpush.msra.mxu0 0.0
  %268 = vmatpush.msra.mxu0 0.0
  %269 = vmatpush.msra.mxu0 0.0
  %270 = vmatpush.msra.mxu0 0.0
  %271 = vmatpush.msra.mxu0 0.0
  %272 = vmatpush.msra.mxu0 0.0
  %273 = vmatpush.msra.mxu0 0.0
  %274 = vmatpush.msra.mxu0 %v46
  %275 = vmatpush.msra.mxu0 %v45
  %276 = vmatpush.msra.mxu0 %v44
  %277 = vmatpush.msra.mxu0 %v43
  %278 = vmatmul.f32.gmra.mxu0 %v199
  %v279 = vpop.f32.mrf.mxu0
  %v280 = vadd.f32 %v260, %v279
  %281 = vdwg.mxu0
  %282 = vmatpush.msra.mxu0 0.0
  %283 = vmatpush.msra.mxu0 0.0
  %284 = vmatpush.msra.mxu0 0.0
  %285 = vmatpush.msra.mxu0 0.0
  %286 = vmatpush.msra.mxu0 0.0
  %287 = vmatpush.msra.mxu0 0.0
  %288 = vmatpush.msra.mxu0 0.0
  %289 = vmatpush.msra.mxu0 0.0
  %290 = vmatpush.msra.mxu0 0.0
  %291 = vmatpush.msra.mxu0 0.0
  %292 = vmatpush.msra.mxu0 0.0
  %293 = vmatpush.msra.mxu0 0.0
  %294 = vmatpush.msra.mxu0 %v54
  %295 = vmatpush.msra.mxu0 %v53
  %296 = vmatpush.msra.mxu0 %v52
  %297 = vmatpush.msra.mxu0 %v51
  %298 = vmatmul.f32.gmra.mxu0 %v136
  %v299 = vpop.f32.mrf.mxu0
  %v300 = vadd.f32 0.0, %v299
  %301 = vdwg.mxu0
  %v302 = vadd.f32 %v280, %v300
  %v303 = vxor.u32 %v302, 2147483648
  %v304 = vmul.f32 %v303, 1.442695
  %v305 = vpow.pop %v304
  %v306 = vadd.f32 %v305, 1.0
  %v307 = vrcp.pop %v306
  %v308 = vmul.f32 %v306, %v307
  %v309 = vsub.f32 1.0, %v308
  %v310 = vmul.f32 %v307, %v309
  %v311 = vadd.f32 %v307, %v310
  %vm312 = vweird.f32 %v306
  %vm313 = vweird.f32 %v307
  %vm314 = vmor %vm312, %vm313
  %v315 = vsel %vm314, %v307, %v311
  %v316 = vand.u32 2147483647, %v306
  %vm317 = vcmp.eq.f32.partialorder %v316, 8.507059e+37
  %v318 = vand.u32 %v306, 2147483648
  %v319 = vor.u32 1.1754944e-38, %v318
  %v320 = vsel %vm317, %v319, %v315
  %v321 = vmul.f32 1.0, %v320
  %v322 = vtanh.pop %v302
  %v323 = vmul.f32 %v321, 0.0
  %325 = vrot.lane.b32.xlu0 %v322, 64
  %v326 = vpop.permute.xlu0 %325
  %v328 = vmul.f32 %v321, %v326
  %330 = vrot.lane.b32.xlu0 %v328, 32
  %v331 = vpop.permute.xlu0 %330
  %v333 = vadd.f32 %v323, %v331
  %v334 = vtanh.pop %v333
  %336 = vrot.lane.b32.xlu0 %v334, 64
  %v337 = vpop.permute.xlu0 %336
  %v339 = vmul.f32 %v321, %v337
  %341 = vrot.lane.b32.xlu0 %v258, 32
  %v342 = vpop.permute.xlu0 %341
  %v343 = vsel %vm134, %v342, 0
  %345 = vmatpush.msra.mxu0 0.0
  %346 = vmatpush.msra.mxu0 0.0
  %347 = vmatpush.msra.mxu0 0.0
  %348 = vmatpush.msra.mxu0 0.0
  %349 = vmatpush.msra.mxu0 0.0
  %350 = vmatpush.msra.mxu0 0.0
  %351 = vmatpush.msra.mxu0 0.0
  %352 = vmatpush.msra.mxu0 0.0
  %353 = vmatpush.msra.mxu0 0.0
  %354 = vmatpush.msra.mxu0 0.0
  %355 = vmatpush.msra.mxu0 0.0
  %356 = vmatpush.msra.mxu0 0.0
  %357 = vmatpush.msra.mxu0 %v50
  %358 = vmatpush.msra.mxu0 %v49
  %359 = vmatpush.msra.mxu0 %v48
  %360 = vmatpush.msra.mxu0 %v47
  %361 = vmatmul.f32.gmra.mxu0 %v343
  %v362 = vpop.f32.mrf.mxu0
  %v363 = vadd.f32 0.0, %v362
  %364 = vdwg.mxu0
  %v365 = vadd.f32 %v117, %v363
  %v366 = vxor.u32 %v365, 2147483648
  %v367 = vmul.f32 %v366, 1.442695
  %v368 = vpow.pop %v367
  %v369 = vadd.f32 %v368, 1.0
  %v370 = vrcp.pop %v369
  %v371 = vmul.f32 %v369, %v370
  %v372 = vsub.f32 1.0, %v371
  %v373 = vmul.f32 %v370, %v372
  %v374 = vadd.f32 %v370, %v373
  %vm375 = vweird.f32 %v369
  %vm376 = vweird.f32 %v370
  %vm377 = vmor %vm375, %vm376
  %v378 = vsel %vm377, %v370, %v374
  %v379 = vand.u32 2147483647, %v369
  %vm380 = vcmp.eq.f32.partialorder %v379, 8.507059e+37
  %v381 = vand.u32 %v369, 2147483648
  %v382 = vor.u32 1.1754944e-38, %v381
  %v383 = vsel %vm380, %v382, %v378
  %v384 = vmul.f32 1.0, %v383
  %v385 = vtanh.pop %v365
  %v386 = vmul.f32 %v384, %v252
  %388 = vrot.lane.b32.xlu0 %v385, 64
  %v389 = vpop.permute.xlu0 %388
  %v391 = vmul.f32 %v384, %v389
  %393 = vrot.lane.b32.xlu0 %v391, 32
  %v394 = vpop.permute.xlu0 %393
  %v396 = vadd.f32 %v386, %v394
  %v397 = vtanh.pop %v396
  %399 = vrot.lane.b32.xlu0 %v397, 64
  %v400 = vpop.permute.xlu0 %399
  %v402 = vmul.f32 %v384, %v400
  %403 = vmatpush.msra.mxu0 0.0
  %404 = vmatpush.msra.mxu0 0.0
  %405 = vmatpush.msra.mxu0 0.0
  %406 = vmatpush.msra.mxu0 0.0
  %407 = vmatpush.msra.mxu0 0.0
  %408 = vmatpush.msra.mxu0 0.0
  %409 = vmatpush.msra.mxu0 0.0
  %410 = vmatpush.msra.mxu0 0.0
  %411 = vmatpush.msra.mxu0 0.0
  %412 = vmatpush.msra.mxu0 0.0
  %413 = vmatpush.msra.mxu0 0.0
  %414 = vmatpush.msra.mxu0 0.0
  %415 = vmatpush.msra.mxu0 %v46
  %416 = vmatpush.msra.mxu0 %v45
  %417 = vmatpush.msra.mxu0 %v44
  %418 = vmatpush.msra.mxu0 %v43
  %419 = vmatmul.f32.gmra.mxu0 %v343
  %v420 = vpop.f32.mrf.mxu0
  %v421 = vadd.f32 %v260, %v420
  %422 = vdwg.mxu0
  %424 = vrot.lane.b32.xlu0 %v339, 32
  %v425 = vpop.permute.xlu0 %424
  %v426 = vsel %vm134, %v425, 0
  %428 = vmatpush.msra.mxu0 0.0
  %429 = vmatpush.msra.mxu0 0.0
  %430 = vmatpush.msra.mxu0 0.0
  %431 = vmatpush.msra.mxu0 0.0
  %432 = vmatpush.msra.mxu0 0.0
  %433 = vmatpush.msra.mxu0 0.0
  %434 = vmatpush.msra.mxu0 0.0
  %435 = vmatpush.msra.mxu0 0.0
  %436 = vmatpush.msra.mxu0 0.0
  %437 = vmatpush.msra.mxu0 0.0
  %438 = vmatpush.msra.mxu0 0.0
  %439 = vmatpush.msra.mxu0 0.0
  %440 = vmatpush.msra.mxu0 %v54
  %441 = vmatpush.msra.mxu0 %v53
  %442 = vmatpush.msra.mxu0 %v52
  %443 = vmatpush.msra.mxu0 %v51
  %444 = vmatmul.f32.gmra.mxu0 %v426
  %v445 = vpop.f32.mrf.mxu0
  %v446 = vadd.f32 0.0, %v445
  %447 = vdwg.mxu0
  %v448 = vadd.f32 %v421, %v446
  %v449 = vxor.u32 %v448, 2147483648
  %v450 = vmul.f32 %v449, 1.442695
  %v451 = vpow.pop %v450
  %v452 = vadd.f32 %v451, 1.0
  %v453 = vrcp.pop %v452
  %v454 = vmul.f32 %v452, %v453
  %v455 = vsub.f32 1.0, %v454
  %v456 = vmul.f32 %v453, %v455
  %v457 = vadd.f32 %v453, %v456
  %vm458 = vweird.f32 %v452
  %vm459 = vweird.f32 %v453
  %vm460 = vmor %vm458, %vm459
  %v461 = vsel %vm460, %v453, %v457
  %v462 = vand.u32 2147483647, %v452
  %vm463 = vcmp.eq.f32.partialorder %v462, 8.507059e+37
  %v464 = vand.u32 %v452, 2147483648
  %v465 = vor.u32 1.1754944e-38, %v464
  %v466 = vsel %vm463, %v465, %v461
  %v467 = vmul.f32 1.0, %v466
  %v468 = vtanh.pop %v448
  %v469 = vmul.f32 %v467, %v333
  %471 = vrot.lane.b32.xlu0 %v468, 64
  %v472 = vpop.permute.xlu0 %471
  %v474 = vmul.f32 %v467, %v472
  %476 = vrot.lane.b32.xlu0 %v474, 32
  %v477 = vpop.permute.xlu0 %476
  %v479 = vadd.f32 %v469, %v477
  %v480 = vtanh.pop %v479
  %482 = vrot.lane.b32.xlu0 %v480, 64
  %v483 = vpop.permute.xlu0 %482
  %v485 = vmul.f32 %v467, %v483
  %487 = vrot.lane.b32.xlu0 %v402, 32
  %v488 = vpop.permute.xlu0 %487
  %v489 = vsel %vm134, %v488, 0
  %491 = vmatpush.msra.mxu0 0.0
  %492 = vmatpush.msra.mxu0 0.0
  %493 = vmatpush.msra.mxu0 0.0
  %494 = vmatpush.msra.mxu0 0.0
  %495 = vmatpush.msra.mxu0 0.0
  %496 = vmatpush.msra.mxu0 0.0
  %497 = vmatpush.msra.mxu0 0.0
  %498 = vmatpush.msra.mxu0 0.0
  %499 = vmatpush.msra.mxu0 0.0
  %500 = vmatpush.msra.mxu0 0.0
  %501 = vmatpush.msra.mxu0 0.0
  %502 = vmatpush.msra.mxu0 0.0
  %503 = vmatpush.msra.mxu0 %v50
  %504 = vmatpush.msra.mxu0 %v49
  %505 = vmatpush.msra.mxu0 %v48
  %506 = vmatpush.msra.mxu0 %v47
  %507 = vmatmul.f32.gmra.mxu0 %v489
  %v508 = vpop.f32.mrf.mxu0
  %v509 = vadd.f32 0.0, %v508
  %510 = vdwg.mxu0
  %v511 = vadd.f32 %v120, %v509
  %v512 = vxor.u32 %v511, 2147483648
  %v513 = vmul.f32 %v512, 1.442695
  %v514 = vpow.pop %v513
  %v515 = vadd.f32 %v514, 1.0
  %v516 = vrcp.pop %v515
  %v517 = vmul.f32 %v515, %v516
  %v518 = vsub.f32 1.0, %v517
  %v519 = vmul.f32 %v516, %v518
  %v520 = vadd.f32 %v516, %v519
  %vm521 = vweird.f32 %v515
  %vm522 = vweird.f32 %v516
  %vm523 = vmor %vm521, %vm522
  %v524 = vsel %vm523, %v516, %v520
  %v525 = vand.u32 2147483647, %v515
  %vm526 = vcmp.eq.f32.partialorder %v525, 8.507059e+37
  %v527 = vand.u32 %v515, 2147483648
  %v528 = vor.u32 1.1754944e-38, %v527
  %v529 = vsel %vm526, %v528, %v524
  %v530 = vmul.f32 1.0, %v529
  %v531 = vtanh.pop %v511
  %v532 = vmul.f32 %v530, %v396
  %534 = vrot.lane.b32.xlu0 %v531, 64
  %v535 = vpop.permute.xlu0 %534
  %v537 = vmul.f32 %v530, %v535
  %539 = vrot.lane.b32.xlu0 %v537, 32
  %v540 = vpop.permute.xlu0 %539
  %v542 = vadd.f32 %v532, %v540
  %v543 = vtanh.pop %v542
  %545 = vrot.lane.b32.xlu0 %v543, 64
  %v546 = vpop.permute.xlu0 %545
  %v548 = vmul.f32 %v530, %v546
  %549 = vmatpush.msra.mxu0 0.0
  %550 = vmatpush.msra.mxu0 0.0
  %551 = vmatpush.msra.mxu0 0.0
  %552 = vmatpush.msra.mxu0 0.0
  %553 = vmatpush.msra.mxu0 0.0
  %554 = vmatpush.msra.mxu0 0.0
  %555 = vmatpush.msra.mxu0 0.0
  %556 = vmatpush.msra.mxu0 0.0
  %557 = vmatpush.msra.mxu0 0.0
  %558 = vmatpush.msra.mxu0 0.0
  %559 = vmatpush.msra.mxu0 0.0
  %560 = vmatpush.msra.mxu0 0.0
  %561 = vmatpush.msra.mxu0 %v46
  %562 = vmatpush.msra.mxu0 %v45
  %563 = vmatpush.msra.mxu0 %v44
  %564 = vmatpush.msra.mxu0 %v43
  %565 = vmatmul.f32.gmra.mxu0 %v489
  %v566 = vpop.f32.mrf.mxu0
  %v567 = vadd.f32 %v260, %v566
  %568 = vdwg.mxu0
  %570 = vrot.lane.b32.xlu0 %v485, 32
  %v571 = vpop.permute.xlu0 %570
  %v572 = vsel %vm134, %v571, 0
  %574 = vmatpush.msra.mxu0 0.0
  %575 = vmatpush.msra.mxu0 0.0
  %576 = vmatpush.msra.mxu0 0.0
  %577 = vmatpush.msra.mxu0 0.0
  %578 = vmatpush.msra.mxu0 0.0
  %579 = vmatpush.msra.mxu0 0.0
  %580 = vmatpush.msra.mxu0 0.0
  %581 = vmatpush.msra.mxu0 0.0
  %582 = vmatpush.msra.mxu0 0.0
  %583 = vmatpush.msra.mxu0 0.0
  %584 = vmatpush.msra.mxu0 0.0
  %585 = vmatpush.msra.mxu0 0.0
  %586 = vmatpush.msra.mxu0 %v54
  %587 = vmatpush.msra.mxu0 %v53
  %588 = vmatpush.msra.mxu0 %v52
  %589 = vmatpush.msra.mxu0 %v51
  %590 = vmatmul.f32.gmra.mxu0 %v572
  %v591 = vpop.f32.mrf.mxu0
  %v592 = vadd.f32 0.0, %v591
  %593 = vdwg.mxu0
  %v594 = vadd.f32 %v567, %v592
  %v595 = vxor.u32 %v594, 2147483648
  %v596 = vmul.f32 %v595, 1.442695
  %v597 = vpow.pop %v596
  %v598 = vadd.f32 %v597, 1.0
  %v599 = vrcp.pop %v598
  %v600 = vmul.f32 %v598, %v599
  %v601 = vsub.f32 1.0, %v600
  %v602 = vmul.f32 %v599, %v601
  %v603 = vadd.f32 %v599, %v602
  %vm604 = vweird.f32 %v598
  %vm605 = vweird.f32 %v599
  %vm606 = vmor %vm604, %vm605
  %v607 = vsel %vm606, %v599, %v603
  %v608 = vand.u32 2147483647, %v598
  %vm609 = vcmp.eq.f32.partialorder %v608, 8.507059e+37
  %v610 = vand.u32 %v598, 2147483648
  %v611 = vor.u32 1.1754944e-38, %v610
  %v612 = vsel %vm609, %v611, %v607
  %v613 = vmul.f32 1.0, %v612
  %v614 = vtanh.pop %v594
  %v615 = vmul.f32 %v613, %v479
  %617 = vrot.lane.b32.xlu0 %v614, 64
  %v618 = vpop.permute.xlu0 %617
  %v620 = vmul.f32 %v613, %v618
  %622 = vrot.lane.b32.xlu0 %v620, 32
  %v623 = vpop.permute.xlu0 %622
  %v625 = vadd.f32 %v615, %v623
  %v626 = vtanh.pop %v625
  %628 = vrot.lane.b32.xlu0 %v626, 64
  %v629 = vpop.permute.xlu0 %628
  %v631 = vmul.f32 %v613, %v629
  %633 = vrot.lane.b32.xlu0 %v548, 32
  %v634 = vpop.permute.xlu0 %633
  %v635 = vsel %vm134, %v634, 0
  %637 = vmatpush.msra.mxu0 0.0
  %638 = vmatpush.msra.mxu0 0.0
  %639 = vmatpush.msra.mxu0 0.0
  %640 = vmatpush.msra.mxu0 0.0
  %641 = vmatpush.msra.mxu0 0.0
  %642 = vmatpush.msra.mxu0 0.0
  %643 = vmatpush.msra.mxu0 0.0
  %644 = vmatpush.msra.mxu0 0.0
  %645 = vmatpush.msra.mxu0 0.0
  %646 = vmatpush.msra.mxu0 0.0
  %647 = vmatpush.msra.mxu0 0.0
  %648 = vmatpush.msra.mxu0 0.0
  %649 = vmatpush.msra.mxu0 %v50
  %650 = vmatpush.msra.mxu0 %v49
  %651 = vmatpush.msra.mxu0 %v48
  %652 = vmatpush.msra.mxu0 %v47
  %653 = vmatmul.f32.gmra.mxu0 %v635
  %v654 = vpop.f32.mrf.mxu0
  %v655 = vadd.f32 0.0, %v654
  %656 = vdwg.mxu0
  %v657 = vadd.f32 %v123, %v655
  %v658 = vxor.u32 %v657, 2147483648
  %v659 = vmul.f32 %v658, 1.442695
  %v660 = vpow.pop %v659
  %v661 = vadd.f32 %v660, 1.0
  %v662 = vrcp.pop %v661
  %v663 = vmul.f32 %v661, %v662
  %v664 = vsub.f32 1.0, %v663
  %v665 = vmul.f32 %v662, %v664
  %v666 = vadd.f32 %v662, %v665
  %vm667 = vweird.f32 %v661
  %vm668 = vweird.f32 %v662
  %vm669 = vmor %vm667, %vm668
  %v670 = vsel %vm669, %v662, %v666
  %v671 = vand.u32 2147483647, %v661
  %vm672 = vcmp.eq.f32.partialorder %v671, 8.507059e+37
  %v673 = vand.u32 %v661, 2147483648
  %v674 = vor.u32 1.1754944e-38, %v673
  %v675 = vsel %vm672, %v674, %v670
  %v676 = vmul.f32 1.0, %v675
  %v677 = vtanh.pop %v657
  %v678 = vmul.f32 %v676, %v542
  %680 = vrot.lane.b32.xlu0 %v677, 64
  %v681 = vpop.permute.xlu0 %680
  %v683 = vmul.f32 %v676, %v681
  %685 = vrot.lane.b32.xlu0 %v683, 32
  %v686 = vpop.permute.xlu0 %685
  %v688 = vadd.f32 %v678, %v686
  %v689 = vtanh.pop %v688
  %691 = vrot.lane.b32.xlu0 %v689, 64
  %v692 = vpop.permute.xlu0 %691
  %v694 = vmul.f32 %v676, %v692
  %695 = vmatpush.msra.mxu0 0.0
  %696 = vmatpush.msra.mxu0 0.0
  %697 = vmatpush.msra.mxu0 0.0
  %698 = vmatpush.msra.mxu0 0.0
  %699 = vmatpush.msra.mxu0 0.0
  %700 = vmatpush.msra.mxu0 0.0
  %701 = vmatpush.msra.mxu0 0.0
  %702 = vmatpush.msra.mxu0 0.0
  %703 = vmatpush.msra.mxu0 0.0
  %704 = vmatpush.msra.mxu0 0.0
  %705 = vmatpush.msra.mxu0 0.0
  %706 = vmatpush.msra.mxu0 0.0
  %707 = vmatpush.msra.mxu0 %v46
  %708 = vmatpush.msra.mxu0 %v45
  %709 = vmatpush.msra.mxu0 %v44
  %710 = vmatpush.msra.mxu0 %v43
  %711 = vmatmul.f32.gmra.mxu0 %v635
  %v712 = vpop.f32.mrf.mxu0
  %v713 = vadd.f32 %v260, %v712
  %714 = vdwg.mxu0
  %716 = vrot.lane.b32.xlu0 %v631, 32
  %v717 = vpop.permute.xlu0 %716
  %v718 = vsel %vm134, %v717, 0
  %720 = vmatpush.msra.mxu0 0.0
  %721 = vmatpush.msra.mxu0 0.0
  %722 = vmatpush.msra.mxu0 0.0
  %723 = vmatpush.msra.mxu0 0.0
  %724 = vmatpush.msra.mxu0 0.0
  %725 = vmatpush.msra.mxu0 0.0
  %726 = vmatpush.msra.mxu0 0.0
  %727 = vmatpush.msra.mxu0 0.0
  %728 = vmatpush.msra.mxu0 0.0
  %729 = vmatpush.msra.mxu0 0.0
  %730 = vmatpush.msra.mxu0 0.0
  %731 = vmatpush.msra.mxu0 0.0
  %732 = vmatpush.msra.mxu0 %v54
  %733 = vmatpush.msra.mxu0 %v53
  %734 = vmatpush.msra.mxu0 %v52
  %735 = vmatpush.msra.mxu0 %v51
  %736 = vmatmul.f32.gmra.mxu0 %v718
  %v737 = vpop.f32.mrf.mxu0
  %v738 = vadd.f32 0.0, %v737
  %739 = vdwg.mxu0
  %v740 = vadd.f32 %v713, %v738
  %v741 = vxor.u32 %v740, 2147483648
  %v742 = vmul.f32 %v741, 1.442695
  %v743 = vpow.pop %v742
  %v744 = vadd.f32 %v743, 1.0
  %v745 = vrcp.pop %v744
  %v746 = vmul.f32 %v744, %v745
  %v747 = vsub.f32 1.0, %v746
  %v748 = vmul.f32 %v745, %v747
  %v749 = vadd.f32 %v745, %v748
  %vm750 = vweird.f32 %v744
  %vm751 = vweird.f32 %v745
  %vm752 = vmor %vm750, %vm751
  %v753 = vsel %vm752, %v745, %v749
  %v754 = vand.u32 2147483647, %v744
  %vm755 = vcmp.eq.f32.partialorder %v754, 8.507059e+37
  %v756 = vand.u32 %v744, 2147483648
  %v757 = vor.u32 1.1754944e-38, %v756
  %v758 = vsel %vm755, %v757, %v753
  %v759 = vmul.f32 1.0, %v758
  %v760 = vtanh.pop %v740
  %v761 = vmul.f32 %v759, %v625
  %763 = vrot.lane.b32.xlu0 %v760, 64
  %v764 = vpop.permute.xlu0 %763
  %v766 = vmul.f32 %v759, %v764
  %768 = vrot.lane.b32.xlu0 %v766, 32
  %v769 = vpop.permute.xlu0 %768
  %v771 = vadd.f32 %v761, %v769
  %v772 = vtanh.pop %v771
  %774 = vrot.lane.b32.xlu0 %v772, 64
  %v775 = vpop.permute.xlu0 %774
  %v777 = vmul.f32 %v759, %v775
  %779 = vrot.lane.b32.xlu0 %v694, 32
  %v780 = vpop.permute.xlu0 %779
  %v781 = vsel %vm134, %v780, 0
  %783 = vmatpush.msra.mxu0 0.0
  %784 = vmatpush.msra.mxu0 0.0
  %785 = vmatpush.msra.mxu0 0.0
  %786 = vmatpush.msra.mxu0 0.0
  %787 = vmatpush.msra.mxu0 0.0
  %788 = vmatpush.msra.mxu0 0.0
  %789 = vmatpush.msra.mxu0 0.0
  %790 = vmatpush.msra.mxu0 0.0
  %791 = vmatpush.msra.mxu0 0.0
  %792 = vmatpush.msra.mxu0 0.0
  %793 = vmatpush.msra.mxu0 0.0
  %794 = vmatpush.msra.mxu0 0.0
  %795 = vmatpush.msra.mxu0 %v50
  %796 = vmatpush.msra.mxu0 %v49
  %797 = vmatpush.msra.mxu0 %v48
  %798 = vmatpush.msra.mxu0 %v47
  %799 = vmatmul.f32.gmra.mxu0 %v781
  %v800 = vpop.f32.mrf.mxu0
  %v801 = vadd.f32 0.0, %v800
  %802 = vdwg.mxu0
  %v803 = vadd.f32 %v126, %v801
  %v804 = vxor.u32 %v803, 2147483648
  %v805 = vmul.f32 %v804, 1.442695
  %v806 = vpow.pop %v805
  %v807 = vadd.f32 %v806, 1.0
  %v808 = vrcp.pop %v807
  %v809 = vmul.f32 %v807, %v808
  %v810 = vsub.f32 1.0, %v809
  %v811 = vmul.f32 %v808, %v810
  %v812 = vadd.f32 %v808, %v811
  %vm813 = vweird.f32 %v807
  %vm814 = vweird.f32 %v808
  %vm815 = vmor %vm813, %vm814
  %v816 = vsel %vm815, %v808, %v812
  %v817 = vand.u32 2147483647, %v807
  %vm818 = vcmp.eq.f32.partialorder %v817, 8.507059e+37
  %v819 = vand.u32 %v807, 2147483648
  %v820 = vor.u32 1.1754944e-38, %v819
  %v821 = vsel %vm818, %v820, %v816
  %v822 = vmul.f32 1.0, %v821
  %v823 = vtanh.pop %v803
  %v824 = vmul.f32 %v822, %v688
  %826 = vrot.lane.b32.xlu0 %v823, 64
  %v827 = vpop.permute.xlu0 %826
  %v829 = vmul.f32 %v822, %v827
  %831 = vrot.lane.b32.xlu0 %v829, 32
  %v832 = vpop.permute.xlu0 %831
  %v834 = vadd.f32 %v824, %v832
  %v835 = vtanh.pop %v834
  %837 = vrot.lane.b32.xlu0 %v835, 64
  %v838 = vpop.permute.xlu0 %837
  %v840 = vmul.f32 %v822, %v838
  %841 = vmatpush.msra.mxu0 0.0
  %842 = vmatpush.msra.mxu0 0.0
  %843 = vmatpush.msra.mxu0 0.0
  %844 = vmatpush.msra.mxu0 0.0
  %845 = vmatpush.msra.mxu0 0.0
  %846 = vmatpush.msra.mxu0 0.0
  %847 = vmatpush.msra.mxu0 0.0
  %848 = vmatpush.msra.mxu0 0.0
  %849 = vmatpush.msra.mxu0 0.0
  %850 = vmatpush.msra.mxu0 0.0
  %851 = vmatpush.msra.mxu0 0.0
  %852 = vmatpush.msra.mxu0 0.0
  %853 = vmatpush.msra.mxu0 %v46
  %854 = vmatpush.msra.mxu0 %v45
  %855 = vmatpush.msra.mxu0 %v44
  %856 = vmatpush.msra.mxu0 %v43
  %857 = vmatmul.f32.gmra.mxu0 %v781
  %v858 = vpop.f32.mrf.mxu0
  %v859 = vadd.f32 %v260, %v858
  %860 = vdwg.mxu0
  %862 = vrot.lane.b32.xlu0 %v777, 32
  %v863 = vpop.permute.xlu0 %862
  %v864 = vsel %vm134, %v863, 0
  %866 = vmatpush.msra.mxu0 0.0
  %867 = vmatpush.msra.mxu0 0.0
  %868 = vmatpush.msra.mxu0 0.0
  %869 = vmatpush.msra.mxu0 0.0
  %870 = vmatpush.msra.mxu0 0.0
  %871 = vmatpush.msra.mxu0 0.0
  %872 = vmatpush.msra.mxu0 0.0
  %873 = vmatpush.msra.mxu0 0.0
  %874 = vmatpush.msra.mxu0 0.0
  %875 = vmatpush.msra.mxu0 0.0
  %876 = vmatpush.msra.mxu0 0.0
  %877 = vmatpush.msra.mxu0 0.0
  %878 = vmatpush.msra.mxu0 %v54
  %879 = vmatpush.msra.mxu0 %v53
  %880 = vmatpush.msra.mxu0 %v52
  %881 = vmatpush.msra.mxu0 %v51
  %882 = vmatmul.f32.gmra.mxu0 %v864
  %v883 = vpop.f32.mrf.mxu0
  %v884 = vadd.f32 0.0, %v883
  %885 = vdwg.mxu0
  %v886 = vadd.f32 %v859, %v884
  %v887 = vxor.u32 %v886, 2147483648
  %v888 = vmul.f32 %v887, 1.442695
  %v889 = vpow.pop %v888
  %v890 = vadd.f32 %v889, 1.0
  %v891 = vrcp.pop %v890
  %v892 = vmul.f32 %v890, %v891
  %v893 = vsub.f32 1.0, %v892
  %v894 = vmul.f32 %v891, %v893
  %v895 = vadd.f32 %v891, %v894
  %vm896 = vweird.f32 %v890
  %vm897 = vweird.f32 %v891
  %vm898 = vmor %vm896, %vm897
  %v899 = vsel %vm898, %v891, %v895
  %v900 = vand.u32 2147483647, %v890
  %vm901 = vcmp.eq.f32.partialorder %v900, 8.507059e+37
  %v902 = vand.u32 %v890, 2147483648
  %v903 = vor.u32 1.1754944e-38, %v902
  %v904 = vsel %vm901, %v903, %v899
  %v905 = vmul.f32 1.0, %v904
  %v906 = vtanh.pop %v886
  %v907 = vmul.f32 %v905, %v771
  %909 = vrot.lane.b32.xlu0 %v906, 64
  %v910 = vpop.permute.xlu0 %909
  %v912 = vmul.f32 %v905, %v910
  %914 = vrot.lane.b32.xlu0 %v912, 32
  %v915 = vpop.permute.xlu0 %914
  %v917 = vadd.f32 %v907, %v915
  %v918 = vtanh.pop %v917
  %920 = vrot.lane.b32.xlu0 %v918, 64
  %v921 = vpop.permute.xlu0 %920
  %v923 = vmul.f32 %v905, %v921
  %925 = vrot.lane.b32.xlu0 %v840, 32
  %v926 = vpop.permute.xlu0 %925
  %v927 = vsel %vm134, %v926, 0
  %929 = vmatpush.msra.mxu0 0.0
  %930 = vmatpush.msra.mxu0 0.0
  %931 = vmatpush.msra.mxu0 0.0
  %932 = vmatpush.msra.mxu0 0.0
  %933 = vmatpush.msra.mxu0 0.0
  %934 = vmatpush.msra.mxu0 0.0
  %935 = vmatpush.msra.mxu0 0.0
  %936 = vmatpush.msra.mxu0 0.0
  %937 = vmatpush.msra.mxu0 0.0
  %938 = vmatpush.msra.mxu0 0.0
  %939 = vmatpush.msra.mxu0 0.0
  %940 = vmatpush.msra.mxu0 0.0
  %941 = vmatpush.msra.mxu0 %v50
  %942 = vmatpush.msra.mxu0 %v49
  %943 = vmatpush.msra.mxu0 %v48
  %944 = vmatpush.msra.mxu0 %v47
  %945 = vmatmul.f32.gmra.mxu0 %v927
  %v946 = vpop.f32.mrf.mxu0
  %v947 = vadd.f32 0.0, %v946
  %948 = vdwg.mxu0
  %v949 = vadd.f32 %v129, %v947
  %v950 = vxor.u32 %v949, 2147483648
  %v951 = vmul.f32 %v950, 1.442695
  %v952 = vpow.pop %v951
  %v953 = vadd.f32 %v952, 1.0
  %v954 = vrcp.pop %v953
  %v955 = vmul.f32 %v953, %v954
  %v956 = vsub.f32 1.0, %v955
  %v957 = vmul.f32 %v954, %v956
  %v958 = vadd.f32 %v954, %v957
  %vm959 = vweird.f32 %v953
  %vm960 = vweird.f32 %v954
  %vm961 = vmor %vm959, %vm960
  %v962 = vsel %vm961, %v954, %v958
  %v963 = vand.u32 2147483647, %v953
  %vm964 = vcmp.eq.f32.partialorder %v963, 8.507059e+37
  %v965 = vand.u32 %v953, 2147483648
  %v966 = vor.u32 1.1754944e-38, %v965
  %v967 = vsel %vm964, %v966, %v962
  %v968 = vmul.f32 1.0, %v967
  %v969 = vtanh.pop %v949
  %v970 = vmul.f32 %v968, %v834
  %972 = vrot.lane.b32.xlu0 %v969, 64
  %v973 = vpop.permute.xlu0 %972
  %v975 = vmul.f32 %v968, %v973
  %977 = vrot.lane.b32.xlu0 %v975, 32
  %v978 = vpop.permute.xlu0 %977
  %v980 = vadd.f32 %v970, %v978
  %v981 = vtanh.pop %v980
  %983 = vrot.lane.b32.xlu0 %v981, 64
  %v984 = vpop.permute.xlu0 %983
  %v986 = vmul.f32 %v968, %v984
  %987 = vmatpush.msra.mxu0 0.0
  %988 = vmatpush.msra.mxu0 0.0
  %989 = vmatpush.msra.mxu0 0.0
  %990 = vmatpush.msra.mxu0 0.0
  %991 = vmatpush.msra.mxu0 0.0
  %992 = vmatpush.msra.mxu0 0.0
  %993 = vmatpush.msra.mxu0 0.0
  %994 = vmatpush.msra.mxu0 0.0
  %995 = vmatpush.msra.mxu0 0.0
  %996 = vmatpush.msra.mxu0 0.0
  %997 = vmatpush.msra.mxu0 0.0
  %998 = vmatpush.msra.mxu0 0.0
  %999 = vmatpush.msra.mxu0 %v46
  %1000 = vmatpush.msra.mxu0 %v45
  %1001 = vmatpush.msra.mxu0 %v44
  %1002 = vmatpush.msra.mxu0 %v43
  %1003 = vmatmul.f32.gmra.mxu0 %v927
  %v1004 = vpop.f32.mrf.mxu0
  %v1005 = vadd.f32 %v260, %v1004
  %1006 = vdwg.mxu0
  %1008 = vrot.lane.b32.xlu0 %v923, 32
  %v1009 = vpop.permute.xlu0 %1008
  %v1010 = vsel %vm134, %v1009, 0
  %1012 = vmatpush.msra.mxu0 0.0
  %1013 = vmatpush.msra.mxu0 0.0
  %1014 = vmatpush.msra.mxu0 0.0
  %1015 = vmatpush.msra.mxu0 0.0
  %1016 = vmatpush.msra.mxu0 0.0
  %1017 = vmatpush.msra.mxu0 0.0
  %1018 = vmatpush.msra.mxu0 0.0
  %1019 = vmatpush.msra.mxu0 0.0
  %1020 = vmatpush.msra.mxu0 0.0
  %1021 = vmatpush.msra.mxu0 0.0
  %1022 = vmatpush.msra.mxu0 0.0
  %1023 = vmatpush.msra.mxu0 0.0
  %1024 = vmatpush.msra.mxu0 %v54
  %1025 = vmatpush.msra.mxu0 %v53
  %1026 = vmatpush.msra.mxu0 %v52
  %1027 = vmatpush.msra.mxu0 %v51
  %1028 = vmatmul.f32.gmra.mxu0 %v1010
  %v1029 = vpop.f32.mrf.mxu0
  %v1030 = vadd.f32 0.0, %v1029
  %1031 = vdwg.mxu0
  %v1032 = vadd.f32 %v1005, %v1030
  %v1033 = vxor.u32 %v1032, 2147483648
  %v1034 = vmul.f32 %v1033, 1.442695
  %v1035 = vpow.pop %v1034
  %v1036 = vadd.f32 %v1035, 1.0
  %v1037 = vrcp.pop %v1036
  %v1038 = vmul.f32 %v1036, %v1037
  %v1039 = vsub.f32 1.0, %v1038
  %v1040 = vmul.f32 %v1037, %v1039
  %v1041 = vadd.f32 %v1037, %v1040
  %vm1042 = vweird.f32 %v1036
  %vm1043 = vweird.f32 %v1037
  %vm1044 = vmor %vm1042, %vm1043
  %v1045 = vsel %vm1044, %v1037, %v1041
  %v1046 = vand.u32 2147483647, %v1036
  %vm1047 = vcmp.eq.f32.partialorder %v1046, 8.507059e+37
  %v1048 = vand.u32 %v1036, 2147483648
  %v1049 = vor.u32 1.1754944e-38, %v1048
  %v1050 = vsel %vm1047, %v1049, %v1045
  %v1051 = vmul.f32 1.0, %v1050
  %v1052 = vtanh.pop %v1032
  %v1053 = vmul.f32 %v1051, %v917
  %1055 = vrot.lane.b32.xlu0 %v1052, 64
  %v1056 = vpop.permute.xlu0 %1055
  %v1058 = vmul.f32 %v1051, %v1056
  %1060 = vrot.lane.b32.xlu0 %v1058, 32
  %v1061 = vpop.permute.xlu0 %1060
  %v1063 = vadd.f32 %v1053, %v1061
  %v1064 = vtanh.pop %v1063
  %1066 = vrot.lane.b32.xlu0 %v1064, 64
  %v1067 = vpop.permute.xlu0 %1066
  %v1069 = vmul.f32 %v1051, %v1067
  %1071 = vrot.lane.b32.xlu0 %v986, 32
  %v1072 = vpop.permute.xlu0 %1071
  %v1073 = vsel %vm134, %v1072, 0
  %1075 = vmatpush.msra.mxu0 0.0
  %1076 = vmatpush.msra.mxu0 0.0
  %1077 = vmatpush.msra.mxu0 0.0
  %1078 = vmatpush.msra.mxu0 0.0
  %1079 = vmatpush.msra.mxu0 0.0
  %1080 = vmatpush.msra.mxu0 0.0
  %1081 = vmatpush.msra.mxu0 0.0
  %1082 = vmatpush.msra.mxu0 0.0
  %1083 = vmatpush.msra.mxu0 0.0
  %1084 = vmatpush.msra.mxu0 0.0
  %1085 = vmatpush.msra.mxu0 0.0
  %1086 = vmatpush.msra.mxu0 0.0
  %1087 = vmatpush.msra.mxu0 %v50
  %1088 = vmatpush.msra.mxu0 %v49
  %1089 = vmatpush.msra.mxu0 %v48
  %1090 = vmatpush.msra.mxu0 %v47
  %1091 = vmatmul.f32.gmra.mxu0 %v1073
  %v1092 = vpop.f32.mrf.mxu0
  %v1093 = vadd.f32 0.0, %v1092
  %1094 = vdwg.mxu0
  %v1095 = vadd.f32 %v132, %v1093
  %v1096 = vxor.u32 %v1095, 2147483648
  %v1097 = vmul.f32 %v1096, 1.442695
  %v1098 = vpow.pop %v1097
  %v1099 = vadd.f32 %v1098, 1.0
  %v1100 = vrcp.pop %v1099
  %v1101 = vmul.f32 %v1099, %v1100
  %v1102 = vsub.f32 1.0, %v1101
  %v1103 = vmul.f32 %v1100, %v1102
  %v1104 = vadd.f32 %v1100, %v1103
  %vm1105 = vweird.f32 %v1099
  %vm1106 = vweird.f32 %v1100
  %vm1107 = vmor %vm1105, %vm1106
  %v1108 = vsel %vm1107, %v1100, %v1104
  %v1109 = vand.u32 2147483647, %v1099
  %vm1110 = vcmp.eq.f32.partialorder %v1109, 8.507059e+37
  %v1111 = vand.u32 %v1099, 2147483648
  %v1112 = vor.u32 1.1754944e-38, %v1111
  %v1113 = vsel %vm1110, %v1112, %v1108
  %v1114 = vmul.f32 1.0, %v1113
  %v1115 = vtanh.pop %v1095
  %v1116 = vmul.f32 %v1114, %v980
  %1118 = vrot.lane.b32.xlu0 %v1115, 64
  %v1119 = vpop.permute.xlu0 %1118
  %v1121 = vmul.f32 %v1114, %v1119
  %1123 = vrot.lane.b32.xlu0 %v1121, 32
  %v1124 = vpop.permute.xlu0 %1123
  %v1126 = vadd.f32 %v1116, %v1124
  %v1127 = vtanh.pop %v1126
  %1129 = vrot.lane.b32.xlu0 %v1127, 64
  %v1130 = vpop.permute.xlu0 %1129
  %v1132 = vmul.f32 %v1114, %v1130
  %1133 = vmatpush.msra.mxu0 0.0
  %1134 = vmatpush.msra.mxu0 0.0
  %1135 = vmatpush.msra.mxu0 0.0
  %1136 = vmatpush.msra.mxu0 0.0
  %1137 = vmatpush.msra.mxu0 0.0
  %1138 = vmatpush.msra.mxu0 0.0
  %1139 = vmatpush.msra.mxu0 0.0
  %1140 = vmatpush.msra.mxu0 0.0
  %1141 = vmatpush.msra.mxu0 0.0
  %1142 = vmatpush.msra.mxu0 0.0
  %1143 = vmatpush.msra.mxu0 0.0
  %1144 = vmatpush.msra.mxu0 0.0
  %1145 = vmatpush.msra.mxu0 %v46
  %1146 = vmatpush.msra.mxu0 %v45
  %1147 = vmatpush.msra.mxu0 %v44
  %1148 = vmatpush.msra.mxu0 %v43
  %1149 = vmatmul.f32.gmra.mxu0 %v1073
  %v1150 = vpop.f32.mrf.mxu0
  %v1151 = vadd.f32 %v260, %v1150
  %1152 = vdwg.mxu0
  %1154 = vrot.lane.b32.xlu0 %v1069, 32
  %v1155 = vpop.permute.xlu0 %1154
  %v1156 = vsel %vm134, %v1155, 0
  %1158 = vmatpush.msra.mxu0 0.0
  %1159 = vmatpush.msra.mxu0 0.0
  %1160 = vmatpush.msra.mxu0 0.0
  %1161 = vmatpush.msra.mxu0 0.0
  %1162 = vmatpush.msra.mxu0 0.0
  %1163 = vmatpush.msra.mxu0 0.0
  %1164 = vmatpush.msra.mxu0 0.0
  %1165 = vmatpush.msra.mxu0 0.0
  %1166 = vmatpush.msra.mxu0 0.0
  %1167 = vmatpush.msra.mxu0 0.0
  %1168 = vmatpush.msra.mxu0 0.0
  %1169 = vmatpush.msra.mxu0 0.0
  %1170 = vmatpush.msra.mxu0 %v54
  %1171 = vmatpush.msra.mxu0 %v53
  %1172 = vmatpush.msra.mxu0 %v52
  %1173 = vmatpush.msra.mxu0 %v51
  %1174 = vmatmul.f32.gmra.mxu0 %v1156
  %v1175 = vpop.f32.mrf.mxu0
  %v1176 = vadd.f32 0.0, %v1175
  %1177 = vdwg.mxu0
  %v1178 = vadd.f32 %v1151, %v1176
  %v1179 = vxor.u32 %v1178, 2147483648
  %v1180 = vmul.f32 %v1179, 1.442695
  %v1181 = vpow.pop %v1180
  %v1182 = vadd.f32 %v1181, 1.0
  %v1183 = vrcp.pop %v1182
  %v1184 = vmul.f32 %v1182, %v1183
  %v1185 = vsub.f32 1.0, %v1184
  %v1186 = vmul.f32 %v1183, %v1185
  %v1187 = vadd.f32 %v1183, %v1186
  %vm1188 = vweird.f32 %v1182
  %vm1189 = vweird.f32 %v1183
  %vm1190 = vmor %vm1188, %vm1189
  %v1191 = vsel %vm1190, %v1183, %v1187
  %v1192 = vand.u32 2147483647, %v1182
  %vm1193 = vcmp.eq.f32.partialorder %v1192, 8.507059e+37
  %v1194 = vand.u32 %v1182, 2147483648
  %v1195 = vor.u32 1.1754944e-38, %v1194
  %v1196 = vsel %vm1193, %v1195, %v1191
  %v1197 = vmul.f32 1.0, %v1196
  %v1198 = vtanh.pop %v1178
  %v1199 = vmul.f32 %v1197, %v1063
  %1201 = vrot.lane.b32.xlu0 %v1198, 64
  %v1202 = vpop.permute.xlu0 %1201
  %v1204 = vmul.f32 %v1197, %v1202
  %1206 = vrot.lane.b32.xlu0 %v1204, 32
  %v1207 = vpop.permute.xlu0 %1206
  %v1209 = vadd.f32 %v1199, %v1207
  %v1210 = vtanh.pop %v1209
  %1212 = vrot.lane.b32.xlu0 %v1210, 64
  %v1213 = vpop.permute.xlu0 %1212
  %v1215 = vmul.f32 %v1197, %v1213
  %1217 = vrot.lane.b32.xlu0 %v1132, 32
  %v1218 = vpop.permute.xlu0 %1217
  %v1219 = vsel %vm134, %v1218, 0
  %1221 = vmatpush.msra.mxu0 0.0
  %1222 = vmatpush.msra.mxu0 0.0
  %1223 = vmatpush.msra.mxu0 0.0
  %1224 = vmatpush.msra.mxu0 0.0
  %1225 = vmatpush.msra.mxu0 0.0
  %1226 = vmatpush.msra.mxu0 0.0
  %1227 = vmatpush.msra.mxu0 0.0
  %1228 = vmatpush.msra.mxu0 0.0
  %1229 = vmatpush.msra.mxu0 0.0
  %1230 = vmatpush.msra.mxu0 0.0
  %1231 = vmatpush.msra.mxu0 0.0
  %1232 = vmatpush.msra.mxu0 0.0
  %1233 = vmatpush.msra.mxu0 %v46
  %1234 = vmatpush.msra.mxu0 %v45
  %1235 = vmatpush.msra.mxu0 %v44
  %1236 = vmatpush.msra.mxu0 %v43
  %1237 = vmatmul.f32.gmra.mxu0 %v1219
  %v1238 = vpop.f32.mrf.mxu0
  %v1239 = vadd.f32 %v260, %v1238
  %1240 = vdwg.mxu0
  %1242 = vrot.lane.b32.xlu0 %v1215, 32
  %v1243 = vpop.permute.xlu0 %1242
  %v1244 = vsel %vm134, %v1243, 0
  %1246 = vmatpush.msra.mxu0 0.0
  %1247 = vmatpush.msra.mxu0 0.0
  %1248 = vmatpush.msra.mxu0 0.0
  %1249 = vmatpush.msra.mxu0 0.0
  %1250 = vmatpush.msra.mxu0 0.0
  %1251 = vmatpush.msra.mxu0 0.0
  %1252 = vmatpush.msra.mxu0 0.0
  %1253 = vmatpush.msra.mxu0 0.0
  %1254 = vmatpush.msra.mxu0 0.0
  %1255 = vmatpush.msra.mxu0 0.0
  %1256 = vmatpush.msra.mxu0 0.0
  %1257 = vmatpush.msra.mxu0 0.0
  %1258 = vmatpush.msra.mxu0 %v54
  %1259 = vmatpush.msra.mxu0 %v53
  %1260 = vmatpush.msra.mxu0 %v52
  %1261 = vmatpush.msra.mxu0 %v51
  %1262 = vmatmul.f32.gmra.mxu0 %v1244
  %v1263 = vpop.f32.mrf.mxu0
  %v1264 = vadd.f32 0.0, %v1263
  %1265 = vdwg.mxu0
  %v1266 = vadd.f32 %v1239, %v1264
  %v1267 = vxor.u32 %v1266, 2147483648
  %v1268 = vmul.f32 %v1267, 1.442695
  %v1269 = vpow.pop %v1268
  %v1270 = vadd.f32 %v1269, 1.0
  %v1271 = vrcp.pop %v1270
  %v1272 = vmul.f32 %v1270, %v1271
  %v1273 = vsub.f32 1.0, %v1272
  %v1274 = vmul.f32 %v1271, %v1273
  %v1275 = vadd.f32 %v1271, %v1274
  %vm1276 = vweird.f32 %v1270
  %vm1277 = vweird.f32 %v1271
  %vm1278 = vmor %vm1276, %vm1277
  %v1279 = vsel %vm1278, %v1271, %v1275
  %v1280 = vand.u32 2147483647, %v1270
  %vm1281 = vcmp.eq.f32.partialorder %v1280, 8.507059e+37
  %v1282 = vand.u32 %v1270, 2147483648
  %v1283 = vor.u32 1.1754944e-38, %v1282
  %v1284 = vsel %vm1281, %v1283, %v1279
  %v1285 = vmul.f32 1.0, %v1284
  %v1286 = vtanh.pop %v1266
  %v1287 = vmul.f32 %v1285, %v1209
  %1289 = vrot.lane.b32.xlu0 %v1286, 64
  %v1290 = vpop.permute.xlu0 %1289
  %v1292 = vmul.f32 %v1285, %v1290
  %1294 = vrot.lane.b32.xlu0 %v1292, 32
  %v1295 = vpop.permute.xlu0 %1294
  %v1297 = vadd.f32 %v1287, %v1295
  %v1298 = vtanh.pop %v1297
  %1300 = vrot.lane.b32.xlu0 %v1298, 64
  %v1301 = vpop.permute.xlu0 %1300
  %v1303 = vmul.f32 %v1285, %v1301
  %v1304 = vld [vmem:[%s1] sm:$0xff]
  %v1305 = vld [vmem:[%s1 + $0x8] sm:$0xff]
  %v1306 = vld [vmem:[%s1 + $0x10] sm:$0xff]
  %v1307 = vld [vmem:[%s1 + $0x18] sm:$0xff]
  %v1308 = vld [vmem:[%s1 + $0x20] sm:$0xff]
  %v1309 = vld [vmem:[%s1 + $0x28] sm:$0xff]
  %v1310 = vld [vmem:[%s1 + $0x30] sm:$0xff]
  %v1311 = vld [vmem:[%s1 + $0x38] sm:$0xff]
  %1313 = vset.pattern.permute.xlu0 0
  %1314 = vperm.xlu0 %1313, %v1304
  %v1315 = vpop.permute.xlu0 %1314
  %1318 = vset.pattern.permute.xlu0 0
  %1319 = vperm.xlu0 %1318, %v1305
  %v1320 = vpop.permute.xlu0 %1319
  %1323 = vset.pattern.permute.xlu0 0
  %1324 = vperm.xlu0 %1323, %v1306
  %v1325 = vpop.permute.xlu0 %1324
  %1328 = vset.pattern.permute.xlu0 0
  %1329 = vperm.xlu0 %1328, %v1307
  %v1330 = vpop.permute.xlu0 %1329
  %1333 = vset.pattern.permute.xlu0 0
  %1334 = vperm.xlu0 %1333, %v1308
  %v1335 = vpop.permute.xlu0 %1334
  %1338 = vset.pattern.permute.xlu0 0
  %1339 = vperm.xlu0 %1338, %v1309
  %v1340 = vpop.permute.xlu0 %1339
  %1343 = vset.pattern.permute.xlu0 0
  %1344 = vperm.xlu0 %1343, %v1310
  %v1345 = vpop.permute.xlu0 %1344
  %1348 = vset.pattern.permute.xlu0 0
  %1349 = vperm.xlu0 %1348, %v1311
  %v1350 = vpop.permute.xlu0 %1349
  %v1352 = vmul.f32 %v339, %v1315
  %v1353 = vmul.f32 %v485, %v1320
  %v1354 = vmul.f32 %v631, %v1325
  %v1355 = vmul.f32 %v777, %v1330
  %v1356 = vmul.f32 %v923, %v1335
  %v1357 = vmul.f32 %v1069, %v1340
  %v1358 = vmul.f32 %v1215, %v1345
  %v1359 = vmul.f32 %v1303, %v1350
  %v1360 = vmax.f32 %v1352, 0.0
  %v1361 = vmax.f32 %v1353, 0.0
  %v1362 = vmax.f32 %v1354, 0.0
  %v1363 = vmax.f32 %v1355, 0.0
  %v1364 = vmax.f32 %v1356, 0.0
  %v1365 = vmax.f32 %v1357, 0.0
  %v1366 = vmax.f32 %v1358, 0.0
  %v1367 = vmax.f32 %v1359, 0.0
  %v1368 = vld [vmem:[%s8] sm:$0xff]
  %v1369 = vld [vmem:[%s8 + $0x8] sm:$0xff]
  %v1370 = vld [vmem:[%s8 + $0x10] sm:$0xff]
  %v1371 = vld [vmem:[%s8 + $0x18] sm:$0xff]
  %v1372 = vld [vmem:[%s9] sm:$0x1]
  %v1374 = vperm.slane %v1372, 0
  %1384 = vrot.lane.b32.xlu0 %v1360, 32
  %v1385 = vpop.permute.xlu0 %1384
  %1386 = vrot.lane.b32.xlu0 %v1361, 32
  %v1387 = vpop.permute.xlu0 %1386
  %1388 = vrot.lane.b32.xlu0 %v1362, 32
  %v1389 = vpop.permute.xlu0 %1388
  %1390 = vrot.lane.b32.xlu0 %v1363, 32
  %v1391 = vpop.permute.xlu0 %1390
  %1392 = vrot.lane.b32.xlu0 %v1364, 32
  %v1393 = vpop.permute.xlu0 %1392
  %1394 = vrot.lane.b32.xlu0 %v1365, 32
  %v1395 = vpop.permute.xlu0 %1394
  %1396 = vrot.lane.b32.xlu0 %v1366, 32
  %v1397 = vpop.permute.xlu0 %1396
  %1398 = vrot.lane.b32.xlu0 %v1367, 32
  %v1399 = vpop.permute.xlu0 %1398
  %v1400 = vsel %vm134, %v1385, 0
  %v1402 = vsel %vm134, %v1387, 0
  %v1404 = vsel %vm134, %v1389, 0
  %v1406 = vsel %vm134, %v1391, 0
  %v1408 = vsel %vm134, %v1393, 0
  %v1410 = vsel %vm134, %v1395, 0
  %v1412 = vsel %vm134, %v1397, 0
  %v1414 = vsel %vm134, %v1399, 0
  %1416 = vmatpush.msra.mxu0 0.0
  %1417 = vmatpush.msra.mxu0 0.0
  %1418 = vmatpush.msra.mxu0 0.0
  %1419 = vmatpush.msra.mxu0 0.0
  %1420 = vmatpush.msra.mxu0 0.0
  %1421 = vmatpush.msra.mxu0 0.0
  %1422 = vmatpush.msra.mxu0 0.0
  %1423 = vmatpush.msra.mxu0 0.0
  %1424 = vmatpush.msra.mxu0 0.0
  %1425 = vmatpush.msra.mxu0 0.0
  %1426 = vmatpush.msra.mxu0 0.0
  %1427 = vmatpush.msra.mxu0 0.0
  %1428 = vmatpush.msra.mxu0 %v1371
  %1429 = vmatpush.msra.mxu0 %v1370
  %1430 = vmatpush.msra.mxu0 %v1369
  %1431 = vmatpush.msra.mxu0 %v1368
  %1432 = vmatmul.f32.gmra.mxu0 %v1400
  %v1433 = vpop.f32.mrf.mxu0
  %v1434 = vadd.f32 %v1374, %v1433
  %1435 = vmatmul.f32.gmra.mxu0 %v1402
  %v1436 = vpop.f32.mrf.mxu0
  %v1437 = vadd.f32 %v1374, %v1436
  %1438 = vmatmul.f32.gmra.mxu0 %v1404
  %v1439 = vpop.f32.mrf.mxu0
  %v1440 = vadd.f32 %v1374, %v1439
  %1441 = vmatmul.f32.gmra.mxu0 %v1406
  %v1442 = vpop.f32.mrf.mxu0
  %v1443 = vadd.f32 %v1374, %v1442
  %1444 = vmatmul.f32.gmra.mxu0 %v1408
  %v1445 = vpop.f32.mrf.mxu0
  %v1446 = vadd.f32 %v1374, %v1445
  %1447 = vmatmul.f32.gmra.mxu0 %v1410
  %v1448 = vpop.f32.mrf.mxu0
  %v1449 = vadd.f32 %v1374, %v1448
  %1450 = vmatmul.f32.gmra.mxu0 %v1412
  %v1451 = vpop.f32.mrf.mxu0
  %v1452 = vadd.f32 %v1374, %v1451
  %1453 = vmatmul.f32.gmra.mxu0 %v1414
  %v1454 = vpop.f32.mrf.mxu0
  %v1455 = vadd.f32 %v1374, %v1454
  %1456 = vdwg.mxu0
  %v1457 = vmax.f32 %v1434, 0.0
  %v1458 = vmax.f32 %v1437, 0.0
  %v1459 = vmax.f32 %v1440, 0.0
  %v1460 = vmax.f32 %v1443, 0.0
  %v1461 = vmax.f32 %v1446, 0.0
  %v1462 = vmax.f32 %v1449, 0.0
  %v1463 = vmax.f32 %v1452, 0.0
  %v1464 = vmax.f32 %v1455, 0.0
  %v1465 = vld [vmem:[%s10] sm:$0xff]
  %v1466 = vld [vmem:[%s10 + $0x8] sm:$0xff]
  %v1467 = vld [vmem:[%s10 + $0x10] sm:$0xff]
  %v1468 = vld [vmem:[%s10 + $0x18] sm:$0xff]
  %v1469 = vld [vmem:[%s11] sm:$0x1]
  %v1471 = vperm.slane %v1469, 0
  %v1474 = vsel %vm134, %v1457, 0
  %v1477 = vsel %vm134, %v1458, 0
  %v1480 = vsel %vm134, %v1459, 0
  %v1483 = vsel %vm134, %v1460, 0
  %v1486 = vsel %vm134, %v1461, 0
  %v1489 = vsel %vm134, %v1462, 0
  %v1492 = vsel %vm134, %v1463, 0
  %v1495 = vsel %vm134, %v1464, 0
  %1497 = vmatpush.msra.mxu0 0.0
  %1498 = vmatpush.msra.mxu0 0.0
  %1499 = vmatpush.msra.mxu0 0.0
  %1500 = vmatpush.msra.mxu0 0.0
  %1501 = vmatpush.msra.mxu0 0.0
  %1502 = vmatpush.msra.mxu0 0.0
  %1503 = vmatpush.msra.mxu0 0.0
  %1504 = vmatpush.msra.mxu0 0.0
  %1505 = vmatpush.msra.mxu0 0.0
  %1506 = vmatpush.msra.mxu0 0.0
  %1507 = vmatpush.msra.mxu0 0.0
  %1508 = vmatpush.msra.mxu0 0.0
  %1509 = vmatpush.msra.mxu0 %v1468
  %1510 = vmatpush.msra.mxu0 %v1467
  %1511 = vmatpush.msra.mxu0 %v1466
  %1512 = vmatpush.msra.mxu0 %v1465
  %1513 = vmatmul.f32.gmra.mxu0 %v1474
  %v1514 = vpop.f32.mrf.mxu0
  %v1515 = vadd.f32 %v1471, %v1514
  %1516 = vmatmul.f32.gmra.mxu0 %v1477
  %v1517 = vpop.f32.mrf.mxu0
  %v1518 = vadd.f32 %v1471, %v1517
  %1519 = vmatmul.f32.gmra.mxu0 %v1480
  %v1520 = vpop.f32.mrf.mxu0
  %v1521 = vadd.f32 %v1471, %v1520
  %1522 = vmatmul.f32.gmra.mxu0 %v1483
  %v1523 = vpop.f32.mrf.mxu0
  %v1524 = vadd.f32 %v1471, %v1523
  %1525 = vmatmul.f32.gmra.mxu0 %v1486
  %v1526 = vpop.f32.mrf.mxu0
  %v1527 = vadd.f32 %v1471, %v1526
  %1528 = vmatmul.f32.gmra.mxu0 %v1489
  %v1529 = vpop.f32.mrf.mxu0
  %v1530 = vadd.f32 %v1471, %v1529
  %1531 = vmatmul.f32.gmra.mxu0 %v1492
  %v1532 = vpop.f32.mrf.mxu0
  %v1533 = vadd.f32 %v1471, %v1532
  %1534 = vmatmul.f32.gmra.mxu0 %v1495
  %v1535 = vpop.f32.mrf.mxu0
  %v1536 = vadd.f32 %v1471, %v1535
  %1537 = vdwg.mxu0
  %1538 = vst.msk [vmem:[%s12] sm:$0xff] %vm68, %v1515
  %1539 = vst.msk [vmem:[%s12 + $0x8] sm:$0xff] %vm68, %v1518
  %1540 = vst.msk [vmem:[%s12 + $0x10] sm:$0xff] %vm68, %v1521
  %1541 = vst.msk [vmem:[%s12 + $0x18] sm:$0xff] %vm68, %v1524
  %1542 = vst.msk [vmem:[%s12 + $0x20] sm:$0xff] %vm68, %v1527
  %1543 = vst.msk [vmem:[%s12 + $0x28] sm:$0xff] %vm68, %v1530
  %1544 = vst.msk [vmem:[%s12 + $0x30] sm:$0xff] %vm68, %v1533
  %1545 = vst.msk [vmem:[%s12 + $0x38] sm:$0xff] %vm68, %v1536
  // Predicated region
  $region50: #{rnn_forward.1} parent=0 // pred_check
    _
  $region51: #{rnn_forward.1} parent=0 // pred_check_branch
    %1547 = sbr.rel (0) target = $region53
  $region52: #{rnn_forward.1} parent=0 // pred_region
    _
  $region53: #{rnn_forward.1} parent=0 // pred_fallthru
    _
  // Predicated region
  $region54: #{rnn_forward.1} parent=0 // pred_check
    _
  $region55: #{rnn_forward.1} parent=0 // pred_check_branch
    %1549 = sbr.rel (0) target = $region57
  $region56: #{rnn_forward.1} parent=0 // pred_region
    _
  $region57: #{rnn_forward.1} parent=0 // pred_fallthru
    _

</llo_original>
